<compile_context>
chip_gen: v5e
topology: v5e:2x2
jax: 0.10.0
libtpu: 0.0.40
codegen_flags: <defaults>
</compile_context>

<pallas_src>
import numpy as np
import jax
import jax.numpy as jnp
from jax.experimental import pallas as pl
from jax.experimental.pallas import tpu as pltpu


# "A @ B^T" dimension numbers (contract lane dims of both operands).
_NT_DIMS = (((1,), (1,)), ((), ()))


# ----------------------------------------------------------------------------
# Fused forward kernel (single invocation, everything resident in VMEM).
# ----------------------------------------------------------------------------
def _fused_forward_kernel(gi_obs_ref, gi_cmd_ref,
                          wh_obs_ref, bh_obs_ref,
                          wh_cmd_ref, bh_cmd_ref,
                          wi_st_ref, bi_st_ref, wh_st_ref, bh_st_ref,
                          h0_st_ref,
                          ws_ref, wc_ref, bc_ref,
                          scores_ref, hstate_ref):
    HP = wh_obs_ref.shape[0]          # lane-padded hidden width (128)
    B = gi_obs_ref.shape[1]
    C = gi_cmd_ref.shape[1]

    def gru_gates(gi, gh, h_prev):
        # PyTorch GRU: gi = x@W_ih + b_ih, gh = h@W_hh + b_hh, gates r|z|n.
        r = jax.nn.sigmoid(gi[:, 0:HP] + gh[:, 0:HP])
        z = jax.nn.sigmoid(gi[:, HP:2 * HP] + gh[:, HP:2 * HP])
        n = jnp.tanh(gi[:, 2 * HP:3 * HP] + r * gh[:, 2 * HP:3 * HP])
        return (1.0 - z) * n + z * h_prev

    def gru_scan(gi_ref, wh_ref, bh_ref, rows):
        wh = wh_ref[...]              # (HP, 3HP) loaded once, loop-invariant
        bh = bh_ref[...]              # (1, 3HP)

        def step(t, h):
            gi = gi_ref[t]            # (rows, 3HP): precomputed x@Wi + b_ih
            gh = jnp.dot(h, wh, preferred_element_type=jnp.float32) + bh
            return gru_gates(gi, gh, h)

        return jax.lax.fori_loop(0, gi_ref.shape[0], step,
                                 jnp.zeros((rows, HP), jnp.float32),
                                 unroll=True)

    # gru_input over the observation sequence; gru_command over the commands.
    h_enc = gru_scan(gi_obs_ref, wh_obs_ref, bh_obs_ref, B)        # (B, HP)
    h_cmd = gru_scan(gi_cmd_ref, wh_cmd_ref, bh_cmd_ref, C)        # (C, HP)

    # gru_state: a single GRU step with input h_enc and hidden h0.
    h_prev = h0_st_ref[...]
    gi_s = (jnp.dot(h_enc, wi_st_ref[...], preferred_element_type=jnp.float32)
            + bi_st_ref[...])
    gh_s = (jnp.dot(h_prev, wh_st_ref[...], preferred_element_type=jnp.float32)
            + bh_st_ref[...])
    h_state = gru_gates(gi_s, gh_s, h_prev)                        # (B, HP)

    # Command-scoring head:
    #   scores[b, c] = relu(ws . h_state[b] + wc . h_cmd[c] + b_cmd)
    s_col = jnp.sum(h_state * ws_ref[...], axis=-1, keepdims=True)  # (B, 1)
    c_row = jax.lax.dot_general(wc_ref[...], h_cmd, _NT_DIMS,
                                preferred_element_type=jnp.float32)  # (1, C)
    scores_ref[...] = jnp.maximum(s_col + c_row + bc_ref[...], 0.0)
    hstate_ref[...] = h_state


# ----------------------------------------------------------------------------
# Parameter packing: torch GRU layout -> lane-padded, gate-fused matrices.
# ----------------------------------------------------------------------------
def _pack_gate_w(w, hp, pad_rows_to=None):
    """Torch GRU weight (3H, D) -> (D_pad, 3*hp); gate columns r|z|n, each
    zero-padded from H to hp lanes (padded hidden lanes stay exactly 0)."""
    h = w.shape[0] // 3
    d = w.shape[1]
    blocks = [jnp.pad(w[g * h:(g + 1) * h, :].T.astype(jnp.float32),
                      ((0, 0), (0, hp - h))) for g in range(3)]
    packed = jnp.concatenate(blocks, axis=1)                   # (D, 3*hp)
    if pad_rows_to is not None and pad_rows_to > d:
        packed = jnp.pad(packed, ((0, pad_rows_to - d), (0, 0)))
    return packed


def _pack_gate_b(b, hp):
    """Torch GRU bias (3H,) -> (1, 3*hp)."""
    h = b.shape[0] // 3
    parts = [jnp.pad(b[g * h:(g + 1) * h].astype(jnp.float32), (0, hp - h))
             for g in range(3)]
    return jnp.concatenate(parts).reshape(1, 3 * hp)


# ----------------------------------------------------------------------------
# Full forward, mirroring GRUNetwork.forward (plus explicit hidden carry).
# ----------------------------------------------------------------------------
def gru_network_forward(params, observations, commands, hidden_state, key):
    # observations: (L_obs, B) int32; commands: (L_cmd, C) int32;
    # hidden_state: (1, B, H) float32.
    _, B = observations.shape
    _, C = commands.shape
    H = hidden_state.shape[-1]
    HP = max(128, -(-H // 128) * 128)            # lane-pad hidden width
    emb = params["embedding"].astype(jnp.float32)

    # --- non-serial work stays in XLA: embedding gather + batched x @ Wi ---
    def input_proj(tokens, gru_p):
        x = jnp.take(emb, tokens, axis=0)                     # (T, R, E)
        t, r, e = x.shape
        wi = _pack_gate_w(gru_p["w_ih"], HP)                  # (E, 3HP)
        bi = _pack_gate_b(gru_p["b_ih"], HP)                  # (1, 3HP)
        return (x.reshape(t * r, e) @ wi + bi).reshape(t, r, 3 * HP)

    gi_obs = input_proj(observations, params["gru_input"])    # (T_obs,B,3HP)
    gi_cmd = input_proj(commands, params["gru_command"])      # (T_cmd,C,3HP)

    p_in, p_cmd, p_st = (params["gru_input"], params["gru_command"],
                         params["gru_state"])
    wh_obs = _pack_gate_w(p_in["w_hh"], HP, pad_rows_to=HP)   # (HP, 3HP)
    bh_obs = _pack_gate_b(p_in["b_hh"], HP)
    wh_cmd = _pack_gate_w(p_cmd["w_hh"], HP, pad_rows_to=HP)
    bh_cmd = _pack_gate_b(p_cmd["b_hh"], HP)
    wi_st = _pack_gate_w(p_st["w_ih"], HP, pad_rows_to=HP)    # input dim = H
    bi_st = _pack_gate_b(p_st["b_ih"], HP)
    wh_st = _pack_gate_w(p_st["w_hh"], HP, pad_rows_to=HP)
    bh_st = _pack_gate_b(p_st["b_hh"], HP)

    h0_st = jnp.pad(hidden_state[0].astype(jnp.float32),
                    ((0, 0), (0, HP - H)))                    # (B, HP)

    wcmd = params["linear_command"]["w"].astype(jnp.float32)  # (1, 2H)
    ws_row = jnp.pad(wcmd[0, :H], (0, HP - H)).reshape(1, HP)
    wc_row = jnp.pad(wcmd[0, H:], (0, HP - H)).reshape(1, HP)
    bc = params["linear_command"]["b"].astype(jnp.float32).reshape(1, 1)

    vmem = pl.BlockSpec(memory_space=pltpu.MemorySpace.VMEM)
    scores2d, hstate_p = pl.pallas_call(
        _fused_forward_kernel,
        out_shape=(jax.ShapeDtypeStruct((B, C), jnp.float32),
                   jax.ShapeDtypeStruct((B, HP), jnp.float32)),
        in_specs=[vmem] * 14,
        out_specs=(vmem, vmem),
    )(gi_obs, gi_cmd, wh_obs, bh_obs, wh_cmd, bh_cmd,
      wi_st, bi_st, wh_st, bh_st, h0_st, ws_row, wc_row, bc)

    h_state = hstate_p[:, :H]                                 # (B, H)

    # Value head: lane-width-1 output -> cheaper as one tiny XLA op on the
    # lane-dense hidden state the kernel already returns.
    value = (h_state @ params["linear"]["w"].astype(jnp.float32).T
             + params["linear"]["b"].astype(jnp.float32))     # (B, 1)

    scores = scores2d[None]                                   # (1, B, C)
    # TODO(synk): torch.multinomial's RNG stream is not reproducible in JAX;
    # jax.random.categorical on the relu'd scores samples from the identical
    # softmax distribution without the in-kernel softmax / log(probs) step.
    idx = jax.random.categorical(key, scores2d, axis=-1)
    index = idx.reshape(1, B, 1).astype(jnp.int32)            # (1, B, 1)
    new_hidden = h_state[None]                                # (1, B, H)
    return scores, index, value[None], new_hidden


# ----------------------------------------------------------------------------
# Parameters (deterministic synthetic init matching PyTorch shapes).
# ----------------------------------------------------------------------------
def init_params(key, vocab, embedding_size, hidden_size):
    E, H = embedding_size, hidden_size
    ks = jax.random.split(key, 20)
    s = 1.0 / np.sqrt(H)

    def u(k, shape):
        return jax.random.uniform(k, shape, jnp.float32, -s, s)

    def gru_params(k0, k1, k2, k3, in_size):
        return {"w_ih": u(k0, (3 * H, in_size)), "w_hh": u(k1, (3 * H, H)),
                "b_ih": u(k2, (3 * H,)), "b_hh": u(k3, (3 * H,))}

    return {
        "embedding": jax.random.normal(ks[0], (vocab, E), jnp.float32),
        "gru_input": gru_params(ks[1], ks[2], ks[3], ks[4], E),
        "gru_command": gru_params(ks[5], ks[6], ks[7], ks[8], E),
        "gru_state": gru_params(ks[9], ks[10], ks[11], ks[12], H),
        "linear": {"w": u(ks[13], (1, H)), "b": u(ks[14], (1,))},
        "linear_command": {"w": u(ks[15], (1, 2 * H)), "b": u(ks[16], (1,))},
    }


# ----------------------------------------------------------------------------
# Pure-JAX reference (for correctness check only).
# ----------------------------------------------------------------------------
def _gru_ref(x, p, h0):
    H = h0.shape[-1]
    w_ih, w_hh, b_ih, b_hh = p["w_ih"], p["w_hh"], p["b_ih"], p["b_hh"]

    def step(h, x_t):
        gi = x_t @ w_ih.T + b_ih
        gh = h @ w_hh.T + b_hh
        r = jax.nn.sigmoid(gi[:, :H] + gh[:, :H])
        z = jax.nn.sigmoid(gi[:, H:2 * H] + gh[:, H:2 * H])
        n = jnp.tanh(gi[:, 2 * H:] + r * gh[:, 2 * H:])
        return (1.0 - z) * n + z * h, None

    h_final, _ = jax.lax.scan(step, h0, x)
    return h_final


def _forward_ref(params, observations, commands, hidden_state):
    B = observations.shape[1]
    C = commands.shape[1]
    H = hidden_state.shape[-1]
    emb = params["embedding"]
    eo = jnp.take(emb, observations, axis=0)
    h_enc = _gru_ref(eo, params["gru_input"], jnp.zeros((B, H), jnp.float32))
    h_state = _gru_ref(h_enc[None], params["gru_state"], hidden_state[0])
    ec = jnp.take(emb, commands, axis=0)
    h_cmd = _gru_ref(ec, params["gru_command"], jnp.zeros((C, H), jnp.float32))
    value = h_state @ params["linear"]["w"].T + params["linear"]["b"]
    inp = jnp.concatenate(
        [jnp.broadcast_to(h_state[:, None, :], (B, C, H)),
         jnp.broadcast_to(h_cmd[None, :, :], (B, C, H))], axis=-1)
    lin = inp @ params["linear_command"]["w"].T + params["linear_command"]["b"]
    scores = jax.nn.relu(lin)[..., 0]
    return scores[None], value[None], h_state


if __name__ == "__main__":
    vocab, embedding_size, hidden_size = 50, 16, 32
    batch_size, num_commands = 2, 5
    obs_len, cmd_len = 8, 6

    key = jax.random.PRNGKey(0)
    k_obs, k_cmd, k_sample = jax.random.split(key, 3)
    observations = jax.random.randint(k_obs, (obs_len, batch_size), 0, vocab,
                                      dtype=jnp.int32)
    commands = jax.random.randint(k_cmd, (cmd_len, num_commands), 0, vocab,
                                  dtype=jnp.int32)
    params = init_params(jax.random.PRNGKey(1), vocab, embedding_size,
                         hidden_size)
    # corresponds to self.init_hidden(batch_size)
    hidden_state = jnp.zeros((1, batch_size, hidden_size), jnp.float32)

    fwd = jax.jit(gru_network_forward)
    scores, index, value, new_hidden = fwd(params, observations, commands,
                                           hidden_state, k_sample)
    jax.block_until_ready((scores, index, value, new_hidden))

    assert scores.shape == (1, batch_size, num_commands)
    assert index.shape == (1, batch_size, 1)
    assert value.shape == (1, batch_size, 1)
    assert new_hidden.shape == (1, batch_size, hidden_size)

    s_ref, v_ref, h_ref = _forward_ref(params, observations, commands,
                                       hidden_state)
    np.testing.assert_allclose(np.asarray(scores), np.asarray(s_ref),
                               rtol=5e-3, atol=5e-3)
    np.testing.assert_allclose(np.asarray(value), np.asarray(v_ref),
                               rtol=5e-3, atol=5e-3)
    np.testing.assert_allclose(np.asarray(new_hidden), np.asarray(h_ref[None]),
                               rtol=5e-3, atol=5e-3)
    print("KERNEL_OK")
</pallas_src>

<mosaic_0001>
module attributes {stable_mosaic.version = 11 : i64} {
  func.func @_fused_forward_kernel(%arg0: memref<8x2x384xf32, #tpu.memory_space<vmem>>, %arg1: memref<6x5x384xf32, #tpu.memory_space<vmem>>, %arg2: memref<128x384xf32, #tpu.memory_space<vmem>>, %arg3: memref<1x384xf32, #tpu.memory_space<vmem>>, %arg4: memref<128x384xf32, #tpu.memory_space<vmem>>, %arg5: memref<1x384xf32, #tpu.memory_space<vmem>>, %arg6: memref<128x384xf32, #tpu.memory_space<vmem>>, %arg7: memref<1x384xf32, #tpu.memory_space<vmem>>, %arg8: memref<128x384xf32, #tpu.memory_space<vmem>>, %arg9: memref<1x384xf32, #tpu.memory_space<vmem>>, %arg10: memref<2x128xf32, #tpu.memory_space<vmem>>, %arg11: memref<1x128xf32, #tpu.memory_space<vmem>>, %arg12: memref<1x128xf32, #tpu.memory_space<vmem>>, %arg13: memref<1x1xf32, #tpu.memory_space<vmem>>, %arg14: memref<2x5xf32, #tpu.memory_space<vmem>>, %arg15: memref<2x128xf32, #tpu.memory_space<vmem>>) attributes {dimension_semantics = [], scalar_prefetch = 0 : i64, scratch_operands = 0 : i64, tpu.core_type = #tpu.core_type<tc>} {
    %c0 = arith.constant 0 : index
    %c0_0 = arith.constant 0 : index
    %0 = vector.load %arg2[%c0, %c0_0] : memref<128x384xf32, #tpu.memory_space<vmem>>, vector<128x384xf32>
    %c0_1 = arith.constant 0 : index
    %c0_2 = arith.constant 0 : index
    %1 = vector.load %arg3[%c0_1, %c0_2] : memref<1x384xf32, #tpu.memory_space<vmem>>, vector<1x384xf32>
    %cst = arith.constant 0.000000e+00 : f32
    %2 = vector.broadcast %cst : f32 to vector<2x128xf32>
    %c0_i32 = arith.constant 0 : i32
    %3 = arith.index_cast %c0_i32 : i32 to index
    %c0_3 = arith.constant 0 : index
    %c0_4 = arith.constant 0 : index
    %4 = vector.load %arg0[%3, %c0_3, %c0_4] : memref<8x2x384xf32, #tpu.memory_space<vmem>>, vector<1x2x384xf32>
    %5 = vector.shape_cast %4 : vector<1x2x384xf32> to vector<2x384xf32>
    %cst_5 = arith.constant dense<0.000000e+00> : vector<2x384xf32>
    %6 = tpu.matmul %2, %0, %cst_5 {dimension_numbers = #tpu.dot_dimension_numbers<[1], [0], [0], [1], [0, 0, 1, 1], [], []>} : vector<2x128xf32>, vector<128x384xf32>, vector<2x384xf32> -> vector<2x384xf32>
    %7 = vector.broadcast %1 : vector<1x384xf32> to vector<2x384xf32>
    %8 = arith.addf %6, %7 : vector<2x384xf32>
    %9 = vector.extract_strided_slice %5 {offsets = [0, 0], sizes = [2, 128], strides = [1, 1]} : vector<2x384xf32> to vector<2x128xf32>
    %10 = vector.extract_strided_slice %8 {offsets = [0, 0], sizes = [2, 128], strides = [1, 1]} : vector<2x384xf32> to vector<2x128xf32>
    %11 = arith.addf %9, %10 : vector<2x128xf32>
    %12 = arith.negf %11 : vector<2x128xf32>
    %13 = math.exp %12 : vector<2x128xf32>
    %cst_6 = arith.constant 1.000000e+00 : f32
    %14 = vector.broadcast %cst_6 : f32 to vector<2x128xf32>
    %15 = arith.addf %14, %13 : vector<2x128xf32>
    %16 = arith.divf %14, %15 : vector<2x128xf32>
    %17 = vector.extract_strided_slice %5 {offsets = [0, 128], sizes = [2, 128], strides = [1, 1]} : vector<2x384xf32> to vector<2x128xf32>
    %18 = vector.extract_strided_slice %8 {offsets = [0, 128], sizes = [2, 128], strides = [1, 1]} : vector<2x384xf32> to vector<2x128xf32>
    %19 = arith.addf %17, %18 : vector<2x128xf32>
    %20 = arith.negf %19 : vector<2x128xf32>
    %21 = math.exp %20 : vector<2x128xf32>
    %cst_7 = arith.constant 1.000000e+00 : f32
    %22 = vector.broadcast %cst_7 : f32 to vector<2x128xf32>
    %23 = arith.addf %22, %21 : vector<2x128xf32>
    %24 = arith.divf %22, %23 : vector<2x128xf32>
    %25 = vector.extract_strided_slice %5 {offsets = [0, 256], sizes = [2, 128], strides = [1, 1]} : vector<2x384xf32> to vector<2x128xf32>
    %26 = vector.extract_strided_slice %8 {offsets = [0, 256], sizes = [2, 128], strides = [1, 1]} : vector<2x384xf32> to vector<2x128xf32>
    %27 = arith.mulf %16, %26 : vector<2x128xf32>
    %28 = arith.addf %25, %27 : vector<2x128xf32>
    %29 = math.tanh %28 : vector<2x128xf32>
    %cst_8 = arith.constant 1.000000e+00 : f32
    %30 = vector.broadcast %cst_8 : f32 to vector<2x128xf32>
    %31 = arith.subf %30, %24 : vector<2x128xf32>
    %32 = arith.mulf %31, %29 : vector<2x128xf32>
    %33 = arith.mulf %24, %2 : vector<2x128xf32>
    %34 = arith.addf %32, %33 : vector<2x128xf32>
    %c1_i32 = arith.constant 1 : i32
    %35 = arith.index_cast %c1_i32 : i32 to index
    %c0_9 = arith.constant 0 : index
    %c0_10 = arith.constant 0 : index
    %36 = vector.load %arg0[%35, %c0_9, %c0_10] : memref<8x2x384xf32, #tpu.memory_space<vmem>>, vector<1x2x384xf32>
    %37 = vector.shape_cast %36 : vector<1x2x384xf32> to vector<2x384xf32>
    %cst_11 = arith.constant dense<0.000000e+00> : vector<2x384xf32>
    %38 = tpu.matmul %34, %0, %cst_11 {dimension_numbers = #tpu.dot_dimension_numbers<[1], [0], [0], [1], [0, 0, 1, 1], [], []>} : vector<2x128xf32>, vector<128x384xf32>, vector<2x384xf32> -> vector<2x384xf32>
    %39 = vector.broadcast %1 : vector<1x384xf32> to vector<2x384xf32>
    %40 = arith.addf %38, %39 : vector<2x384xf32>
    %41 = vector.extract_strided_slice %37 {offsets = [0, 0], sizes = [2, 128], strides = [1, 1]} : vector<2x384xf32> to vector<2x128xf32>
    %42 = vector.extract_strided_slice %40 {offsets = [0, 0], sizes = [2, 128], strides = [1, 1]} : vector<2x384xf32> to vector<2x128xf32>
    %43 = arith.addf %41, %42 : vector<2x128xf32>
    %44 = arith.negf %43 : vector<2x128xf32>
    %45 = math.exp %44 : vector<2x128xf32>
    %cst_12 = arith.constant 1.000000e+00 : f32
    %46 = vector.broadcast %cst_12 : f32 to vector<2x128xf32>
    %47 = arith.addf %46, %45 : vector<2x128xf32>
    %48 = arith.divf %46, %47 : vector<2x128xf32>
    %49 = vector.extract_strided_slice %37 {offsets = [0, 128], sizes = [2, 128], strides = [1, 1]} : vector<2x384xf32> to vector<2x128xf32>
    %50 = vector.extract_strided_slice %40 {offsets = [0, 128], sizes = [2, 128], strides = [1, 1]} : vector<2x384xf32> to vector<2x128xf32>
    %51 = arith.addf %49, %50 : vector<2x128xf32>
    %52 = arith.negf %51 : vector<2x128xf32>
    %53 = math.exp %52 : vector<2x128xf32>
    %cst_13 = arith.constant 1.000000e+00 : f32
    %54 = vector.broadcast %cst_13 : f32 to vector<2x128xf32>
    %55 = arith.addf %54, %53 : vector<2x128xf32>
    %56 = arith.divf %54, %55 : vector<2x128xf32>
    %57 = vector.extract_strided_slice %37 {offsets = [0, 256], sizes = [2, 128], strides = [1, 1]} : vector<2x384xf32> to vector<2x128xf32>
    %58 = vector.extract_strided_slice %40 {offsets = [0, 256], sizes = [2, 128], strides = [1, 1]} : vector<2x384xf32> to vector<2x128xf32>
    %59 = arith.mulf %48, %58 : vector<2x128xf32>
    %60 = arith.addf %57, %59 : vector<2x128xf32>
    %61 = math.tanh %60 : vector<2x128xf32>
    %cst_14 = arith.constant 1.000000e+00 : f32
    %62 = vector.broadcast %cst_14 : f32 to vector<2x128xf32>
    %63 = arith.subf %62, %56 : vector<2x128xf32>
    %64 = arith.mulf %63, %61 : vector<2x128xf32>
    %65 = arith.mulf %56, %34 : vector<2x128xf32>
    %66 = arith.addf %64, %65 : vector<2x128xf32>
    %c2_i32 = arith.constant 2 : i32
    %67 = arith.index_cast %c2_i32 : i32 to index
    %c0_15 = arith.constant 0 : index
    %c0_16 = arith.constant 0 : index
    %68 = vector.load %arg0[%67, %c0_15, %c0_16] : memref<8x2x384xf32, #tpu.memory_space<vmem>>, vector<1x2x384xf32>
    %69 = vector.shape_cast %68 : vector<1x2x384xf32> to vector<2x384xf32>
    %cst_17 = arith.constant dense<0.000000e+00> : vector<2x384xf32>
    %70 = tpu.matmul %66, %0, %cst_17 {dimension_numbers = #tpu.dot_dimension_numbers<[1], [0], [0], [1], [0, 0, 1, 1], [], []>} : vector<2x128xf32>, vector<128x384xf32>, vector<2x384xf32> -> vector<2x384xf32>
    %71 = vector.broadcast %1 : vector<1x384xf32> to vector<2x384xf32>
    %72 = arith.addf %70, %71 : vector<2x384xf32>
    %73 = vector.extract_strided_slice %69 {offsets = [0, 0], sizes = [2, 128], strides = [1, 1]} : vector<2x384xf32> to vector<2x128xf32>
    %74 = vector.extract_strided_slice %72 {offsets = [0, 0], sizes = [2, 128], strides = [1, 1]} : vector<2x384xf32> to vector<2x128xf32>
    %75 = arith.addf %73, %74 : vector<2x128xf32>
    %76 = arith.negf %75 : vector<2x128xf32>
    %77 = math.exp %76 : vector<2x128xf32>
    %cst_18 = arith.constant 1.000000e+00 : f32
    %78 = vector.broadcast %cst_18 : f32 to vector<2x128xf32>
    %79 = arith.addf %78, %77 : vector<2x128xf32>
    %80 = arith.divf %78, %79 : vector<2x128xf32>
    %81 = vector.extract_strided_slice %69 {offsets = [0, 128], sizes = [2, 128], strides = [1, 1]} : vector<2x384xf32> to vector<2x128xf32>
    %82 = vector.extract_strided_slice %72 {offsets = [0, 128], sizes = [2, 128], strides = [1, 1]} : vector<2x384xf32> to vector<2x128xf32>
    %83 = arith.addf %81, %82 : vector<2x128xf32>
    %84 = arith.negf %83 : vector<2x128xf32>
    %85 = math.exp %84 : vector<2x128xf32>
    %cst_19 = arith.constant 1.000000e+00 : f32
    %86 = vector.broadcast %cst_19 : f32 to vector<2x128xf32>
    %87 = arith.addf %86, %85 : vector<2x128xf32>
    %88 = arith.divf %86, %87 : vector<2x128xf32>
    %89 = vector.extract_strided_slice %69 {offsets = [0, 256], sizes = [2, 128], strides = [1, 1]} : vector<2x384xf32> to vector<2x128xf32>
    %90 = vector.extract_strided_slice %72 {offsets = [0, 256], sizes = [2, 128], strides = [1, 1]} : vector<2x384xf32> to vector<2x128xf32>
    %91 = arith.mulf %80, %90 : vector<2x128xf32>
    %92 = arith.addf %89, %91 : vector<2x128xf32>
    %93 = math.tanh %92 : vector<2x128xf32>
    %cst_20 = arith.constant 1.000000e+00 : f32
    %94 = vector.broadcast %cst_20 : f32 to vector<2x128xf32>
    %95 = arith.subf %94, %88 : vector<2x128xf32>
    %96 = arith.mulf %95, %93 : vector<2x128xf32>
    %97 = arith.mulf %88, %66 : vector<2x128xf32>
    %98 = arith.addf %96, %97 : vector<2x128xf32>
    %c3_i32 = arith.constant 3 : i32
    %99 = arith.index_cast %c3_i32 : i32 to index
    %c0_21 = arith.constant 0 : index
    %c0_22 = arith.constant 0 : index
    %100 = vector.load %arg0[%99, %c0_21, %c0_22] : memref<8x2x384xf32, #tpu.memory_space<vmem>>, vector<1x2x384xf32>
    %101 = vector.shape_cast %100 : vector<1x2x384xf32> to vector<2x384xf32>
    %cst_23 = arith.constant dense<0.000000e+00> : vector<2x384xf32>
    %102 = tpu.matmul %98, %0, %cst_23 {dimension_numbers = #tpu.dot_dimension_numbers<[1], [0], [0], [1], [0, 0, 1, 1], [], []>} : vector<2x128xf32>, vector<128x384xf32>, vector<2x384xf32> -> vector<2x384xf32>
    %103 = vector.broadcast %1 : vector<1x384xf32> to vector<2x384xf32>
    %104 = arith.addf %102, %103 : vector<2x384xf32>
    %105 = vector.extract_strided_slice %101 {offsets = [0, 0], sizes = [2, 128], strides = [1, 1]} : vector<2x384xf32> to vector<2x128xf32>
    %106 = vector.extract_strided_slice %104 {offsets = [0, 0], sizes = [2, 128], strides = [1, 1]} : vector<2x384xf32> to vector<2x128xf32>
    %107 = arith.addf %105, %106 : vector<2x128xf32>
    %108 = arith.negf %107 : vector<2x128xf32>
    %109 = math.exp %108 : vector<2x128xf32>
    %cst_24 = arith.constant 1.000000e+00 : f32
    %110 = vector.broadcast %cst_24 : f32 to vector<2x128xf32>
    %111 = arith.addf %110, %109 : vector<2x128xf32>
    %112 = arith.divf %110, %111 : vector<2x128xf32>
    %113 = vector.extract_strided_slice %101 {offsets = [0, 128], sizes = [2, 128], strides = [1, 1]} : vector<2x384xf32> to vector<2x128xf32>
    %114 = vector.extract_strided_slice %104 {offsets = [0, 128], sizes = [2, 128], strides = [1, 1]} : vector<2x384xf32> to vector<2x128xf32>
    %115 = arith.addf %113, %114 : vector<2x128xf32>
    %116 = arith.negf %115 : vector<2x128xf32>
    %117 = math.exp %116 : vector<2x128xf32>
    %cst_25 = arith.constant 1.000000e+00 : f32
    %118 = vector.broadcast %cst_25 : f32 to vector<2x128xf32>
    %119 = arith.addf %118, %117 : vector<2x128xf32>
    %120 = arith.divf %118, %119 : vector<2x128xf32>
    %121 = vector.extract_strided_slice %101 {offsets = [0, 256], sizes = [2, 128], strides = [1, 1]} : vector<2x384xf32> to vector<2x128xf32>
    %122 = vector.extract_strided_slice %104 {offsets = [0, 256], sizes = [2, 128], strides = [1, 1]} : vector<2x384xf32> to vector<2x128xf32>
    %123 = arith.mulf %112, %122 : vector<2x128xf32>
    %124 = arith.addf %121, %123 : vector<2x128xf32>
    %125 = math.tanh %124 : vector<2x128xf32>
    %cst_26 = arith.constant 1.000000e+00 : f32
    %126 = vector.broadcast %cst_26 : f32 to vector<2x128xf32>
    %127 = arith.subf %126, %120 : vector<2x128xf32>
    %128 = arith.mulf %127, %125 : vector<2x128xf32>
    %129 = arith.mulf %120, %98 : vector<2x128xf32>
    %130 = arith.addf %128, %129 : vector<2x128xf32>
    %c4_i32 = arith.constant 4 : i32
    %131 = arith.index_cast %c4_i32 : i32 to index
    %c0_27 = arith.constant 0 : index
    %c0_28 = arith.constant 0 : index
    %132 = vector.load %arg0[%131, %c0_27, %c0_28] : memref<8x2x384xf32, #tpu.memory_space<vmem>>, vector<1x2x384xf32>
    %133 = vector.shape_cast %132 : vector<1x2x384xf32> to vector<2x384xf32>
    %cst_29 = arith.constant dense<0.000000e+00> : vector<2x384xf32>
    %134 = tpu.matmul %130, %0, %cst_29 {dimension_numbers = #tpu.dot_dimension_numbers<[1], [0], [0], [1], [0, 0, 1, 1], [], []>} : vector<2x128xf32>, vector<128x384xf32>, vector<2x384xf32> -> vector<2x384xf32>
    %135 = vector.broadcast %1 : vector<1x384xf32> to vector<2x384xf32>
    %136 = arith.addf %134, %135 : vector<2x384xf32>
    %137 = vector.extract_strided_slice %133 {offsets = [0, 0], sizes = [2, 128], strides = [1, 1]} : vector<2x384xf32> to vector<2x128xf32>
    %138 = vector.extract_strided_slice %136 {offsets = [0, 0], sizes = [2, 128], strides = [1, 1]} : vector<2x384xf32> to vector<2x128xf32>
    %139 = arith.addf %137, %138 : vector<2x128xf32>
    %140 = arith.negf %139 : vector<2x128xf32>
    %141 = math.exp %140 : vector<2x128xf32>
    %cst_30 = arith.constant 1.000000e+00 : f32
    %142 = vector.broadcast %cst_30 : f32 to vector<2x128xf32>
    %143 = arith.addf %142, %141 : vector<2x128xf32>
    %144 = arith.divf %142, %143 : vector<2x128xf32>
    %145 = vector.extract_strided_slice %133 {offsets = [0, 128], sizes = [2, 128], strides = [1, 1]} : vector<2x384xf32> to vector<2x128xf32>
    %146 = vector.extract_strided_slice %136 {offsets = [0, 128], sizes = [2, 128], strides = [1, 1]} : vector<2x384xf32> to vector<2x128xf32>
    %147 = arith.addf %145, %146 : vector<2x128xf32>
    %148 = arith.negf %147 : vector<2x128xf32>
    %149 = math.exp %148 : vector<2x128xf32>
    %cst_31 = arith.constant 1.000000e+00 : f32
    %150 = vector.broadcast %cst_31 : f32 to vector<2x128xf32>
    %151 = arith.addf %150, %149 : vector<2x128xf32>
    %152 = arith.divf %150, %151 : vector<2x128xf32>
    %153 = vector.extract_strided_slice %133 {offsets = [0, 256], sizes = [2, 128], strides = [1, 1]} : vector<2x384xf32> to vector<2x128xf32>
    %154 = vector.extract_strided_slice %136 {offsets = [0, 256], sizes = [2, 128], strides = [1, 1]} : vector<2x384xf32> to vector<2x128xf32>
    %155 = arith.mulf %144, %154 : vector<2x128xf32>
    %156 = arith.addf %153, %155 : vector<2x128xf32>
    %157 = math.tanh %156 : vector<2x128xf32>
    %cst_32 = arith.constant 1.000000e+00 : f32
    %158 = vector.broadcast %cst_32 : f32 to vector<2x128xf32>
    %159 = arith.subf %158, %152 : vector<2x128xf32>
    %160 = arith.mulf %159, %157 : vector<2x128xf32>
    %161 = arith.mulf %152, %130 : vector<2x128xf32>
    %162 = arith.addf %160, %161 : vector<2x128xf32>
    %c5_i32 = arith.constant 5 : i32
    %163 = arith.index_cast %c5_i32 : i32 to index
    %c0_33 = arith.constant 0 : index
    %c0_34 = arith.constant 0 : index
    %164 = vector.load %arg0[%163, %c0_33, %c0_34] : memref<8x2x384xf32, #tpu.memory_space<vmem>>, vector<1x2x384xf32>
    %165 = vector.shape_cast %164 : vector<1x2x384xf32> to vector<2x384xf32>
    %cst_35 = arith.constant dense<0.000000e+00> : vector<2x384xf32>
    %166 = tpu.matmul %162, %0, %cst_35 {dimension_numbers = #tpu.dot_dimension_numbers<[1], [0], [0], [1], [0, 0, 1, 1], [], []>} : vector<2x128xf32>, vector<128x384xf32>, vector<2x384xf32> -> vector<2x384xf32>
    %167 = vector.broadcast %1 : vector<1x384xf32> to vector<2x384xf32>
    %168 = arith.addf %166, %167 : vector<2x384xf32>
    %169 = vector.extract_strided_slice %165 {offsets = [0, 0], sizes = [2, 128], strides = [1, 1]} : vector<2x384xf32> to vector<2x128xf32>
    %170 = vector.extract_strided_slice %168 {offsets = [0, 0], sizes = [2, 128], strides = [1, 1]} : vector<2x384xf32> to vector<2x128xf32>
    %171 = arith.addf %169, %170 : vector<2x128xf32>
    %172 = arith.negf %171 : vector<2x128xf32>
    %173 = math.exp %172 : vector<2x128xf32>
    %cst_36 = arith.constant 1.000000e+00 : f32
    %174 = vector.broadcast %cst_36 : f32 to vector<2x128xf32>
    %175 = arith.addf %174, %173 : vector<2x128xf32>
    %176 = arith.divf %174, %175 : vector<2x128xf32>
    %177 = vector.extract_strided_slice %165 {offsets = [0, 128], sizes = [2, 128], strides = [1, 1]} : vector<2x384xf32> to vector<2x128xf32>
    %178 = vector.extract_strided_slice %168 {offsets = [0, 128], sizes = [2, 128], strides = [1, 1]} : vector<2x384xf32> to vector<2x128xf32>
    %179 = arith.addf %177, %178 : vector<2x128xf32>
    %180 = arith.negf %179 : vector<2x128xf32>
    %181 = math.exp %180 : vector<2x128xf32>
    %cst_37 = arith.constant 1.000000e+00 : f32
    %182 = vector.broadcast %cst_37 : f32 to vector<2x128xf32>
    %183 = arith.addf %182, %181 : vector<2x128xf32>
    %184 = arith.divf %182, %183 : vector<2x128xf32>
    %185 = vector.extract_strided_slice %165 {offsets = [0, 256], sizes = [2, 128], strides = [1, 1]} : vector<2x384xf32> to vector<2x128xf32>
    %186 = vector.extract_strided_slice %168 {offsets = [0, 256], sizes = [2, 128], strides = [1, 1]} : vector<2x384xf32> to vector<2x128xf32>
    %187 = arith.mulf %176, %186 : vector<2x128xf32>
    %188 = arith.addf %185, %187 : vector<2x128xf32>
    %189 = math.tanh %188 : vector<2x128xf32>
    %cst_38 = arith.constant 1.000000e+00 : f32
    %190 = vector.broadcast %cst_38 : f32 to vector<2x128xf32>
    %191 = arith.subf %190, %184 : vector<2x128xf32>
    %192 = arith.mulf %191, %189 : vector<2x128xf32>
    %193 = arith.mulf %184, %162 : vector<2x128xf32>
    %194 = arith.addf %192, %193 : vector<2x128xf32>
    %c6_i32 = arith.constant 6 : i32
    %195 = arith.index_cast %c6_i32 : i32 to index
    %c0_39 = arith.constant 0 : index
    %c0_40 = arith.constant 0 : index
    %196 = vector.load %arg0[%195, %c0_39, %c0_40] : memref<8x2x384xf32, #tpu.memory_space<vmem>>, vector<1x2x384xf32>
    %197 = vector.shape_cast %196 : vector<1x2x384xf32> to vector<2x384xf32>
    %cst_41 = arith.constant dense<0.000000e+00> : vector<2x384xf32>
    %198 = tpu.matmul %194, %0, %cst_41 {dimension_numbers = #tpu.dot_dimension_numbers<[1], [0], [0], [1], [0, 0, 1, 1], [], []>} : vector<2x128xf32>, vector<128x384xf32>, vector<2x384xf32> -> vector<2x384xf32>
    %199 = vector.broadcast %1 : vector<1x384xf32> to vector<2x384xf32>
    %200 = arith.addf %198, %199 : vector<2x384xf32>
    %201 = vector.extract_strided_slice %197 {offsets = [0, 0], sizes = [2, 128], strides = [1, 1]} : vector<2x384xf32> to vector<2x128xf32>
    %202 = vector.extract_strided_slice %200 {offsets = [0, 0], sizes = [2, 128], strides = [1, 1]} : vector<2x384xf32> to vector<2x128xf32>
    %203 = arith.addf %201, %202 : vector<2x128xf32>
    %204 = arith.negf %203 : vector<2x128xf32>
    %205 = math.exp %204 : vector<2x128xf32>
    %cst_42 = arith.constant 1.000000e+00 : f32
    %206 = vector.broadcast %cst_42 : f32 to vector<2x128xf32>
    %207 = arith.addf %206, %205 : vector<2x128xf32>
    %208 = arith.divf %206, %207 : vector<2x128xf32>
    %209 = vector.extract_strided_slice %197 {offsets = [0, 128], sizes = [2, 128], strides = [1, 1]} : vector<2x384xf32> to vector<2x128xf32>
    %210 = vector.extract_strided_slice %200 {offsets = [0, 128], sizes = [2, 128], strides = [1, 1]} : vector<2x384xf32> to vector<2x128xf32>
    %211 = arith.addf %209, %210 : vector<2x128xf32>
    %212 = arith.negf %211 : vector<2x128xf32>
    %213 = math.exp %212 : vector<2x128xf32>
    %cst_43 = arith.constant 1.000000e+00 : f32
    %214 = vector.broadcast %cst_43 : f32 to vector<2x128xf32>
    %215 = arith.addf %214, %213 : vector<2x128xf32>
    %216 = arith.divf %214, %215 : vector<2x128xf32>
    %217 = vector.extract_strided_slice %197 {offsets = [0, 256], sizes = [2, 128], strides = [1, 1]} : vector<2x384xf32> to vector<2x128xf32>
    %218 = vector.extract_strided_slice %200 {offsets = [0, 256], sizes = [2, 128], strides = [1, 1]} : vector<2x384xf32> to vector<2x128xf32>
    %219 = arith.mulf %208, %218 : vector<2x128xf32>
    %220 = arith.addf %217, %219 : vector<2x128xf32>
    %221 = math.tanh %220 : vector<2x128xf32>
    %cst_44 = arith.constant 1.000000e+00 : f32
    %222 = vector.broadcast %cst_44 : f32 to vector<2x128xf32>
    %223 = arith.subf %222, %216 : vector<2x128xf32>
    %224 = arith.mulf %223, %221 : vector<2x128xf32>
    %225 = arith.mulf %216, %194 : vector<2x128xf32>
    %226 = arith.addf %224, %225 : vector<2x128xf32>
    %c7_i32 = arith.constant 7 : i32
    %227 = arith.index_cast %c7_i32 : i32 to index
    %c0_45 = arith.constant 0 : index
    %c0_46 = arith.constant 0 : index
    %228 = vector.load %arg0[%227, %c0_45, %c0_46] : memref<8x2x384xf32, #tpu.memory_space<vmem>>, vector<1x2x384xf32>
    %229 = vector.shape_cast %228 : vector<1x2x384xf32> to vector<2x384xf32>
    %cst_47 = arith.constant dense<0.000000e+00> : vector<2x384xf32>
    %230 = tpu.matmul %226, %0, %cst_47 {dimension_numbers = #tpu.dot_dimension_numbers<[1], [0], [0], [1], [0, 0, 1, 1], [], []>} : vector<2x128xf32>, vector<128x384xf32>, vector<2x384xf32> -> vector<2x384xf32>
    %231 = vector.broadcast %1 : vector<1x384xf32> to vector<2x384xf32>
    %232 = arith.addf %230, %231 : vector<2x384xf32>
    %233 = vector.extract_strided_slice %229 {offsets = [0, 0], sizes = [2, 128], strides = [1, 1]} : vector<2x384xf32> to vector<2x128xf32>
    %234 = vector.extract_strided_slice %232 {offsets = [0, 0], sizes = [2, 128], strides = [1, 1]} : vector<2x384xf32> to vector<2x128xf32>
    %235 = arith.addf %233, %234 : vector<2x128xf32>
    %236 = arith.negf %235 : vector<2x128xf32>
    %237 = math.exp %236 : vector<2x128xf32>
    %cst_48 = arith.constant 1.000000e+00 : f32
    %238 = vector.broadcast %cst_48 : f32 to vector<2x128xf32>
    %239 = arith.addf %238, %237 : vector<2x128xf32>
    %240 = arith.divf %238, %239 : vector<2x128xf32>
    %241 = vector.extract_strided_slice %229 {offsets = [0, 128], sizes = [2, 128], strides = [1, 1]} : vector<2x384xf32> to vector<2x128xf32>
    %242 = vector.extract_strided_slice %232 {offsets = [0, 128], sizes = [2, 128], strides = [1, 1]} : vector<2x384xf32> to vector<2x128xf32>
    %243 = arith.addf %241, %242 : vector<2x128xf32>
    %244 = arith.negf %243 : vector<2x128xf32>
    %245 = math.exp %244 : vector<2x128xf32>
    %cst_49 = arith.constant 1.000000e+00 : f32
    %246 = vector.broadcast %cst_49 : f32 to vector<2x128xf32>
    %247 = arith.addf %246, %245 : vector<2x128xf32>
    %248 = arith.divf %246, %247 : vector<2x128xf32>
    %249 = vector.extract_strided_slice %229 {offsets = [0, 256], sizes = [2, 128], strides = [1, 1]} : vector<2x384xf32> to vector<2x128xf32>
    %250 = vector.extract_strided_slice %232 {offsets = [0, 256], sizes = [2, 128], strides = [1, 1]} : vector<2x384xf32> to vector<2x128xf32>
    %251 = arith.mulf %240, %250 : vector<2x128xf32>
    %252 = arith.addf %249, %251 : vector<2x128xf32>
    %253 = math.tanh %252 : vector<2x128xf32>
    %cst_50 = arith.constant 1.000000e+00 : f32
    %254 = vector.broadcast %cst_50 : f32 to vector<2x128xf32>
    %255 = arith.subf %254, %248 : vector<2x128xf32>
    %256 = arith.mulf %255, %253 : vector<2x128xf32>
    %257 = arith.mulf %248, %226 : vector<2x128xf32>
    %258 = arith.addf %256, %257 : vector<2x128xf32>
    %c8_i32 = arith.constant 8 : i32
    %c0_51 = arith.constant 0 : index
    %c0_52 = arith.constant 0 : index
    %259 = vector.load %arg4[%c0_51, %c0_52] : memref<128x384xf32, #tpu.memory_space<vmem>>, vector<128x384xf32>
    %c0_53 = arith.constant 0 : index
    %c0_54 = arith.constant 0 : index
    %260 = vector.load %arg5[%c0_53, %c0_54] : memref<1x384xf32, #tpu.memory_space<vmem>>, vector<1x384xf32>
    %cst_55 = arith.constant 0.000000e+00 : f32
    %261 = vector.broadcast %cst_55 : f32 to vector<5x128xf32>
    %c0_i32_56 = arith.constant 0 : i32
    %262 = arith.index_cast %c0_i32_56 : i32 to index
    %c0_57 = arith.constant 0 : index
    %c0_58 = arith.constant 0 : index
    %263 = vector.load %arg1[%262, %c0_57, %c0_58] : memref<6x5x384xf32, #tpu.memory_space<vmem>>, vector<1x5x384xf32>
    %264 = vector.shape_cast %263 : vector<1x5x384xf32> to vector<5x384xf32>
    %cst_59 = arith.constant dense<0.000000e+00> : vector<5x384xf32>
    %265 = tpu.matmul %261, %259, %cst_59 {dimension_numbers = #tpu.dot_dimension_numbers<[1], [0], [0], [1], [0, 0, 1, 1], [], []>} : vector<5x128xf32>, vector<128x384xf32>, vector<5x384xf32> -> vector<5x384xf32>
    %266 = vector.broadcast %260 : vector<1x384xf32> to vector<5x384xf32>
    %267 = arith.addf %265, %266 : vector<5x384xf32>
    %268 = vector.extract_strided_slice %264 {offsets = [0, 0], sizes = [5, 128], strides = [1, 1]} : vector<5x384xf32> to vector<5x128xf32>
    %269 = vector.extract_strided_slice %267 {offsets = [0, 0], sizes = [5, 128], strides = [1, 1]} : vector<5x384xf32> to vector<5x128xf32>
    %270 = arith.addf %268, %269 : vector<5x128xf32>
    %271 = arith.negf %270 : vector<5x128xf32>
    %272 = math.exp %271 : vector<5x128xf32>
    %cst_60 = arith.constant 1.000000e+00 : f32
    %273 = vector.broadcast %cst_60 : f32 to vector<5x128xf32>
    %274 = arith.addf %273, %272 : vector<5x128xf32>
    %275 = arith.divf %273, %274 : vector<5x128xf32>
    %276 = vector.extract_strided_slice %264 {offsets = [0, 128], sizes = [5, 128], strides = [1, 1]} : vector<5x384xf32> to vector<5x128xf32>
    %277 = vector.extract_strided_slice %267 {offsets = [0, 128], sizes = [5, 128], strides = [1, 1]} : vector<5x384xf32> to vector<5x128xf32>
    %278 = arith.addf %276, %277 : vector<5x128xf32>
    %279 = arith.negf %278 : vector<5x128xf32>
    %280 = math.exp %279 : vector<5x128xf32>
    %cst_61 = arith.constant 1.000000e+00 : f32
    %281 = vector.broadcast %cst_61 : f32 to vector<5x128xf32>
    %282 = arith.addf %281, %280 : vector<5x128xf32>
    %283 = arith.divf %281, %282 : vector<5x128xf32>
    %284 = vector.extract_strided_slice %264 {offsets = [0, 256], sizes = [5, 128], strides = [1, 1]} : vector<5x384xf32> to vector<5x128xf32>
    %285 = vector.extract_strided_slice %267 {offsets = [0, 256], sizes = [5, 128], strides = [1, 1]} : vector<5x384xf32> to vector<5x128xf32>
    %286 = arith.mulf %275, %285 : vector<5x128xf32>
    %287 = arith.addf %284, %286 : vector<5x128xf32>
    %288 = math.tanh %287 : vector<5x128xf32>
    %cst_62 = arith.constant 1.000000e+00 : f32
    %289 = vector.broadcast %cst_62 : f32 to vector<5x128xf32>
    %290 = arith.subf %289, %283 : vector<5x128xf32>
    %291 = arith.mulf %290, %288 : vector<5x128xf32>
    %292 = arith.mulf %283, %261 : vector<5x128xf32>
    %293 = arith.addf %291, %292 : vector<5x128xf32>
    %c1_i32_63 = arith.constant 1 : i32
    %294 = arith.index_cast %c1_i32_63 : i32 to index
    %c0_64 = arith.constant 0 : index
    %c0_65 = arith.constant 0 : index
    %295 = vector.load %arg1[%294, %c0_64, %c0_65] : memref<6x5x384xf32, #tpu.memory_space<vmem>>, vector<1x5x384xf32>
    %296 = vector.shape_cast %295 : vector<1x5x384xf32> to vector<5x384xf32>
    %cst_66 = arith.constant dense<0.000000e+00> : vector<5x384xf32>
    %297 = tpu.matmul %293, %259, %cst_66 {dimension_numbers = #tpu.dot_dimension_numbers<[1], [0], [0], [1], [0, 0, 1, 1], [], []>} : vector<5x128xf32>, vector<128x384xf32>, vector<5x384xf32> -> vector<5x384xf32>
    %298 = vector.broadcast %260 : vector<1x384xf32> to vector<5x384xf32>
    %299 = arith.addf %297, %298 : vector<5x384xf32>
    %300 = vector.extract_strided_slice %296 {offsets = [0, 0], sizes = [5, 128], strides = [1, 1]} : vector<5x384xf32> to vector<5x128xf32>
    %301 = vector.extract_strided_slice %299 {offsets = [0, 0], sizes = [5, 128], strides = [1, 1]} : vector<5x384xf32> to vector<5x128xf32>
    %302 = arith.addf %300, %301 : vector<5x128xf32>
    %303 = arith.negf %302 : vector<5x128xf32>
    %304 = math.exp %303 : vector<5x128xf32>
    %cst_67 = arith.constant 1.000000e+00 : f32
    %305 = vector.broadcast %cst_67 : f32 to vector<5x128xf32>
    %306 = arith.addf %305, %304 : vector<5x128xf32>
    %307 = arith.divf %305, %306 : vector<5x128xf32>
    %308 = vector.extract_strided_slice %296 {offsets = [0, 128], sizes = [5, 128], strides = [1, 1]} : vector<5x384xf32> to vector<5x128xf32>
    %309 = vector.extract_strided_slice %299 {offsets = [0, 128], sizes = [5, 128], strides = [1, 1]} : vector<5x384xf32> to vector<5x128xf32>
    %310 = arith.addf %308, %309 : vector<5x128xf32>
    %311 = arith.negf %310 : vector<5x128xf32>
    %312 = math.exp %311 : vector<5x128xf32>
    %cst_68 = arith.constant 1.000000e+00 : f32
    %313 = vector.broadcast %cst_68 : f32 to vector<5x128xf32>
    %314 = arith.addf %313, %312 : vector<5x128xf32>
    %315 = arith.divf %313, %314 : vector<5x128xf32>
    %316 = vector.extract_strided_slice %296 {offsets = [0, 256], sizes = [5, 128], strides = [1, 1]} : vector<5x384xf32> to vector<5x128xf32>
    %317 = vector.extract_strided_slice %299 {offsets = [0, 256], sizes = [5, 128], strides = [1, 1]} : vector<5x384xf32> to vector<5x128xf32>
    %318 = arith.mulf %307, %317 : vector<5x128xf32>
    %319 = arith.addf %316, %318 : vector<5x128xf32>
    %320 = math.tanh %319 : vector<5x128xf32>
    %cst_69 = arith.constant 1.000000e+00 : f32
    %321 = vector.broadcast %cst_69 : f32 to vector<5x128xf32>
    %322 = arith.subf %321, %315 : vector<5x128xf32>
    %323 = arith.mulf %322, %320 : vector<5x128xf32>
    %324 = arith.mulf %315, %293 : vector<5x128xf32>
    %325 = arith.addf %323, %324 : vector<5x128xf32>
    %c2_i32_70 = arith.constant 2 : i32
    %326 = arith.index_cast %c2_i32_70 : i32 to index
    %c0_71 = arith.constant 0 : index
    %c0_72 = arith.constant 0 : index
    %327 = vector.load %arg1[%326, %c0_71, %c0_72] : memref<6x5x384xf32, #tpu.memory_space<vmem>>, vector<1x5x384xf32>
    %328 = vector.shape_cast %327 : vector<1x5x384xf32> to vector<5x384xf32>
    %cst_73 = arith.constant dense<0.000000e+00> : vector<5x384xf32>
    %329 = tpu.matmul %325, %259, %cst_73 {dimension_numbers = #tpu.dot_dimension_numbers<[1], [0], [0], [1], [0, 0, 1, 1], [], []>} : vector<5x128xf32>, vector<128x384xf32>, vector<5x384xf32> -> vector<5x384xf32>
    %330 = vector.broadcast %260 : vector<1x384xf32> to vector<5x384xf32>
    %331 = arith.addf %329, %330 : vector<5x384xf32>
    %332 = vector.extract_strided_slice %328 {offsets = [0, 0], sizes = [5, 128], strides = [1, 1]} : vector<5x384xf32> to vector<5x128xf32>
    %333 = vector.extract_strided_slice %331 {offsets = [0, 0], sizes = [5, 128], strides = [1, 1]} : vector<5x384xf32> to vector<5x128xf32>
    %334 = arith.addf %332, %333 : vector<5x128xf32>
    %335 = arith.negf %334 : vector<5x128xf32>
    %336 = math.exp %335 : vector<5x128xf32>
    %cst_74 = arith.constant 1.000000e+00 : f32
    %337 = vector.broadcast %cst_74 : f32 to vector<5x128xf32>
    %338 = arith.addf %337, %336 : vector<5x128xf32>
    %339 = arith.divf %337, %338 : vector<5x128xf32>
    %340 = vector.extract_strided_slice %328 {offsets = [0, 128], sizes = [5, 128], strides = [1, 1]} : vector<5x384xf32> to vector<5x128xf32>
    %341 = vector.extract_strided_slice %331 {offsets = [0, 128], sizes = [5, 128], strides = [1, 1]} : vector<5x384xf32> to vector<5x128xf32>
    %342 = arith.addf %340, %341 : vector<5x128xf32>
    %343 = arith.negf %342 : vector<5x128xf32>
    %344 = math.exp %343 : vector<5x128xf32>
    %cst_75 = arith.constant 1.000000e+00 : f32
    %345 = vector.broadcast %cst_75 : f32 to vector<5x128xf32>
    %346 = arith.addf %345, %344 : vector<5x128xf32>
    %347 = arith.divf %345, %346 : vector<5x128xf32>
    %348 = vector.extract_strided_slice %328 {offsets = [0, 256], sizes = [5, 128], strides = [1, 1]} : vector<5x384xf32> to vector<5x128xf32>
    %349 = vector.extract_strided_slice %331 {offsets = [0, 256], sizes = [5, 128], strides = [1, 1]} : vector<5x384xf32> to vector<5x128xf32>
    %350 = arith.mulf %339, %349 : vector<5x128xf32>
    %351 = arith.addf %348, %350 : vector<5x128xf32>
    %352 = math.tanh %351 : vector<5x128xf32>
    %cst_76 = arith.constant 1.000000e+00 : f32
    %353 = vector.broadcast %cst_76 : f32 to vector<5x128xf32>
    %354 = arith.subf %353, %347 : vector<5x128xf32>
    %355 = arith.mulf %354, %352 : vector<5x128xf32>
    %356 = arith.mulf %347, %325 : vector<5x128xf32>
    %357 = arith.addf %355, %356 : vector<5x128xf32>
    %c3_i32_77 = arith.constant 3 : i32
    %358 = arith.index_cast %c3_i32_77 : i32 to index
    %c0_78 = arith.constant 0 : index
    %c0_79 = arith.constant 0 : index
    %359 = vector.load %arg1[%358, %c0_78, %c0_79] : memref<6x5x384xf32, #tpu.memory_space<vmem>>, vector<1x5x384xf32>
    %360 = vector.shape_cast %359 : vector<1x5x384xf32> to vector<5x384xf32>
    %cst_80 = arith.constant dense<0.000000e+00> : vector<5x384xf32>
    %361 = tpu.matmul %357, %259, %cst_80 {dimension_numbers = #tpu.dot_dimension_numbers<[1], [0], [0], [1], [0, 0, 1, 1], [], []>} : vector<5x128xf32>, vector<128x384xf32>, vector<5x384xf32> -> vector<5x384xf32>
    %362 = vector.broadcast %260 : vector<1x384xf32> to vector<5x384xf32>
    %363 = arith.addf %361, %362 : vector<5x384xf32>
    %364 = vector.extract_strided_slice %360 {offsets = [0, 0], sizes = [5, 128], strides = [1, 1]} : vector<5x384xf32> to vector<5x128xf32>
    %365 = vector.extract_strided_slice %363 {offsets = [0, 0], sizes = [5, 128], strides = [1, 1]} : vector<5x384xf32> to vector<5x128xf32>
    %366 = arith.addf %364, %365 : vector<5x128xf32>
    %367 = arith.negf %366 : vector<5x128xf32>
    %368 = math.exp %367 : vector<5x128xf32>
    %cst_81 = arith.constant 1.000000e+00 : f32
    %369 = vector.broadcast %cst_81 : f32 to vector<5x128xf32>
    %370 = arith.addf %369, %368 : vector<5x128xf32>
    %371 = arith.divf %369, %370 : vector<5x128xf32>
    %372 = vector.extract_strided_slice %360 {offsets = [0, 128], sizes = [5, 128], strides = [1, 1]} : vector<5x384xf32> to vector<5x128xf32>
    %373 = vector.extract_strided_slice %363 {offsets = [0, 128], sizes = [5, 128], strides = [1, 1]} : vector<5x384xf32> to vector<5x128xf32>
    %374 = arith.addf %372, %373 : vector<5x128xf32>
    %375 = arith.negf %374 : vector<5x128xf32>
    %376 = math.exp %375 : vector<5x128xf32>
    %cst_82 = arith.constant 1.000000e+00 : f32
    %377 = vector.broadcast %cst_82 : f32 to vector<5x128xf32>
    %378 = arith.addf %377, %376 : vector<5x128xf32>
    %379 = arith.divf %377, %378 : vector<5x128xf32>
    %380 = vector.extract_strided_slice %360 {offsets = [0, 256], sizes = [5, 128], strides = [1, 1]} : vector<5x384xf32> to vector<5x128xf32>
    %381 = vector.extract_strided_slice %363 {offsets = [0, 256], sizes = [5, 128], strides = [1, 1]} : vector<5x384xf32> to vector<5x128xf32>
    %382 = arith.mulf %371, %381 : vector<5x128xf32>
    %383 = arith.addf %380, %382 : vector<5x128xf32>
    %384 = math.tanh %383 : vector<5x128xf32>
    %cst_83 = arith.constant 1.000000e+00 : f32
    %385 = vector.broadcast %cst_83 : f32 to vector<5x128xf32>
    %386 = arith.subf %385, %379 : vector<5x128xf32>
    %387 = arith.mulf %386, %384 : vector<5x128xf32>
    %388 = arith.mulf %379, %357 : vector<5x128xf32>
    %389 = arith.addf %387, %388 : vector<5x128xf32>
    %c4_i32_84 = arith.constant 4 : i32
    %390 = arith.index_cast %c4_i32_84 : i32 to index
    %c0_85 = arith.constant 0 : index
    %c0_86 = arith.constant 0 : index
    %391 = vector.load %arg1[%390, %c0_85, %c0_86] : memref<6x5x384xf32, #tpu.memory_space<vmem>>, vector<1x5x384xf32>
    %392 = vector.shape_cast %391 : vector<1x5x384xf32> to vector<5x384xf32>
    %cst_87 = arith.constant dense<0.000000e+00> : vector<5x384xf32>
    %393 = tpu.matmul %389, %259, %cst_87 {dimension_numbers = #tpu.dot_dimension_numbers<[1], [0], [0], [1], [0, 0, 1, 1], [], []>} : vector<5x128xf32>, vector<128x384xf32>, vector<5x384xf32> -> vector<5x384xf32>
    %394 = vector.broadcast %260 : vector<1x384xf32> to vector<5x384xf32>
    %395 = arith.addf %393, %394 : vector<5x384xf32>
    %396 = vector.extract_strided_slice %392 {offsets = [0, 0], sizes = [5, 128], strides = [1, 1]} : vector<5x384xf32> to vector<5x128xf32>
    %397 = vector.extract_strided_slice %395 {offsets = [0, 0], sizes = [5, 128], strides = [1, 1]} : vector<5x384xf32> to vector<5x128xf32>
    %398 = arith.addf %396, %397 : vector<5x128xf32>
    %399 = arith.negf %398 : vector<5x128xf32>
    %400 = math.exp %399 : vector<5x128xf32>
    %cst_88 = arith.constant 1.000000e+00 : f32
    %401 = vector.broadcast %cst_88 : f32 to vector<5x128xf32>
    %402 = arith.addf %401, %400 : vector<5x128xf32>
    %403 = arith.divf %401, %402 : vector<5x128xf32>
    %404 = vector.extract_strided_slice %392 {offsets = [0, 128], sizes = [5, 128], strides = [1, 1]} : vector<5x384xf32> to vector<5x128xf32>
    %405 = vector.extract_strided_slice %395 {offsets = [0, 128], sizes = [5, 128], strides = [1, 1]} : vector<5x384xf32> to vector<5x128xf32>
    %406 = arith.addf %404, %405 : vector<5x128xf32>
    %407 = arith.negf %406 : vector<5x128xf32>
    %408 = math.exp %407 : vector<5x128xf32>
    %cst_89 = arith.constant 1.000000e+00 : f32
    %409 = vector.broadcast %cst_89 : f32 to vector<5x128xf32>
    %410 = arith.addf %409, %408 : vector<5x128xf32>
    %411 = arith.divf %409, %410 : vector<5x128xf32>
    %412 = vector.extract_strided_slice %392 {offsets = [0, 256], sizes = [5, 128], strides = [1, 1]} : vector<5x384xf32> to vector<5x128xf32>
    %413 = vector.extract_strided_slice %395 {offsets = [0, 256], sizes = [5, 128], strides = [1, 1]} : vector<5x384xf32> to vector<5x128xf32>
    %414 = arith.mulf %403, %413 : vector<5x128xf32>
    %415 = arith.addf %412, %414 : vector<5x128xf32>
    %416 = math.tanh %415 : vector<5x128xf32>
    %cst_90 = arith.constant 1.000000e+00 : f32
    %417 = vector.broadcast %cst_90 : f32 to vector<5x128xf32>
    %418 = arith.subf %417, %411 : vector<5x128xf32>
    %419 = arith.mulf %418, %416 : vector<5x128xf32>
    %420 = arith.mulf %411, %389 : vector<5x128xf32>
    %421 = arith.addf %419, %420 : vector<5x128xf32>
    %c5_i32_91 = arith.constant 5 : i32
    %422 = arith.index_cast %c5_i32_91 : i32 to index
    %c0_92 = arith.constant 0 : index
    %c0_93 = arith.constant 0 : index
    %423 = vector.load %arg1[%422, %c0_92, %c0_93] : memref<6x5x384xf32, #tpu.memory_space<vmem>>, vector<1x5x384xf32>
    %424 = vector.shape_cast %423 : vector<1x5x384xf32> to vector<5x384xf32>
    %cst_94 = arith.constant dense<0.000000e+00> : vector<5x384xf32>
    %425 = tpu.matmul %421, %259, %cst_94 {dimension_numbers = #tpu.dot_dimension_numbers<[1], [0], [0], [1], [0, 0, 1, 1], [], []>} : vector<5x128xf32>, vector<128x384xf32>, vector<5x384xf32> -> vector<5x384xf32>
    %426 = vector.broadcast %260 : vector<1x384xf32> to vector<5x384xf32>
    %427 = arith.addf %425, %426 : vector<5x384xf32>
    %428 = vector.extract_strided_slice %424 {offsets = [0, 0], sizes = [5, 128], strides = [1, 1]} : vector<5x384xf32> to vector<5x128xf32>
    %429 = vector.extract_strided_slice %427 {offsets = [0, 0], sizes = [5, 128], strides = [1, 1]} : vector<5x384xf32> to vector<5x128xf32>
    %430 = arith.addf %428, %429 : vector<5x128xf32>
    %431 = arith.negf %430 : vector<5x128xf32>
    %432 = math.exp %431 : vector<5x128xf32>
    %cst_95 = arith.constant 1.000000e+00 : f32
    %433 = vector.broadcast %cst_95 : f32 to vector<5x128xf32>
    %434 = arith.addf %433, %432 : vector<5x128xf32>
    %435 = arith.divf %433, %434 : vector<5x128xf32>
    %436 = vector.extract_strided_slice %424 {offsets = [0, 128], sizes = [5, 128], strides = [1, 1]} : vector<5x384xf32> to vector<5x128xf32>
    %437 = vector.extract_strided_slice %427 {offsets = [0, 128], sizes = [5, 128], strides = [1, 1]} : vector<5x384xf32> to vector<5x128xf32>
    %438 = arith.addf %436, %437 : vector<5x128xf32>
    %439 = arith.negf %438 : vector<5x128xf32>
    %440 = math.exp %439 : vector<5x128xf32>
    %cst_96 = arith.constant 1.000000e+00 : f32
    %441 = vector.broadcast %cst_96 : f32 to vector<5x128xf32>
    %442 = arith.addf %441, %440 : vector<5x128xf32>
    %443 = arith.divf %441, %442 : vector<5x128xf32>
    %444 = vector.extract_strided_slice %424 {offsets = [0, 256], sizes = [5, 128], strides = [1, 1]} : vector<5x384xf32> to vector<5x128xf32>
    %445 = vector.extract_strided_slice %427 {offsets = [0, 256], sizes = [5, 128], strides = [1, 1]} : vector<5x384xf32> to vector<5x128xf32>
    %446 = arith.mulf %435, %445 : vector<5x128xf32>
    %447 = arith.addf %444, %446 : vector<5x128xf32>
    %448 = math.tanh %447 : vector<5x128xf32>
    %cst_97 = arith.constant 1.000000e+00 : f32
    %449 = vector.broadcast %cst_97 : f32 to vector<5x128xf32>
    %450 = arith.subf %449, %443 : vector<5x128xf32>
    %451 = arith.mulf %450, %448 : vector<5x128xf32>
    %452 = arith.mulf %443, %421 : vector<5x128xf32>
    %453 = arith.addf %451, %452 : vector<5x128xf32>
    %c6_i32_98 = arith.constant 6 : i32
    %c0_99 = arith.constant 0 : index
    %c0_100 = arith.constant 0 : index
    %454 = vector.load %arg10[%c0_99, %c0_100] : memref<2x128xf32, #tpu.memory_space<vmem>>, vector<2x128xf32>
    %c0_101 = arith.constant 0 : index
    %c0_102 = arith.constant 0 : index
    %455 = vector.load %arg6[%c0_101, %c0_102] : memref<128x384xf32, #tpu.memory_space<vmem>>, vector<128x384xf32>
    %cst_103 = arith.constant dense<0.000000e+00> : vector<2x384xf32>
    %456 = tpu.matmul %258, %455, %cst_103 {dimension_numbers = #tpu.dot_dimension_numbers<[1], [0], [0], [1], [0, 0, 1, 1], [], []>} : vector<2x128xf32>, vector<128x384xf32>, vector<2x384xf32> -> vector<2x384xf32>
    %c0_104 = arith.constant 0 : index
    %c0_105 = arith.constant 0 : index
    %457 = vector.load %arg7[%c0_104, %c0_105] : memref<1x384xf32, #tpu.memory_space<vmem>>, vector<1x384xf32>
    %458 = vector.broadcast %457 : vector<1x384xf32> to vector<2x384xf32>
    %459 = arith.addf %456, %458 : vector<2x384xf32>
    %c0_106 = arith.constant 0 : index
    %c0_107 = arith.constant 0 : index
    %460 = vector.load %arg8[%c0_106, %c0_107] : memref<128x384xf32, #tpu.memory_space<vmem>>, vector<128x384xf32>
    %cst_108 = arith.constant dense<0.000000e+00> : vector<2x384xf32>
    %461 = tpu.matmul %454, %460, %cst_108 {dimension_numbers = #tpu.dot_dimension_numbers<[1], [0], [0], [1], [0, 0, 1, 1], [], []>} : vector<2x128xf32>, vector<128x384xf32>, vector<2x384xf32> -> vector<2x384xf32>
    %c0_109 = arith.constant 0 : index
    %c0_110 = arith.constant 0 : index
    %462 = vector.load %arg9[%c0_109, %c0_110] : memref<1x384xf32, #tpu.memory_space<vmem>>, vector<1x384xf32>
    %463 = vector.broadcast %462 : vector<1x384xf32> to vector<2x384xf32>
    %464 = arith.addf %461, %463 : vector<2x384xf32>
    %465 = vector.extract_strided_slice %459 {offsets = [0, 0], sizes = [2, 128], strides = [1, 1]} : vector<2x384xf32> to vector<2x128xf32>
    %466 = vector.extract_strided_slice %464 {offsets = [0, 0], sizes = [2, 128], strides = [1, 1]} : vector<2x384xf32> to vector<2x128xf32>
    %467 = arith.addf %465, %466 : vector<2x128xf32>
    %468 = arith.negf %467 : vector<2x128xf32>
    %469 = math.exp %468 : vector<2x128xf32>
    %cst_111 = arith.constant 1.000000e+00 : f32
    %470 = vector.broadcast %cst_111 : f32 to vector<2x128xf32>
    %471 = arith.addf %470, %469 : vector<2x128xf32>
    %472 = arith.divf %470, %471 : vector<2x128xf32>
    %473 = vector.extract_strided_slice %459 {offsets = [0, 128], sizes = [2, 128], strides = [1, 1]} : vector<2x384xf32> to vector<2x128xf32>
    %474 = vector.extract_strided_slice %464 {offsets = [0, 128], sizes = [2, 128], strides = [1, 1]} : vector<2x384xf32> to vector<2x128xf32>
    %475 = arith.addf %473, %474 : vector<2x128xf32>
    %476 = arith.negf %475 : vector<2x128xf32>
    %477 = math.exp %476 : vector<2x128xf32>
    %cst_112 = arith.constant 1.000000e+00 : f32
    %478 = vector.broadcast %cst_112 : f32 to vector<2x128xf32>
    %479 = arith.addf %478, %477 : vector<2x128xf32>
    %480 = arith.divf %478, %479 : vector<2x128xf32>
    %481 = vector.extract_strided_slice %459 {offsets = [0, 256], sizes = [2, 128], strides = [1, 1]} : vector<2x384xf32> to vector<2x128xf32>
    %482 = vector.extract_strided_slice %464 {offsets = [0, 256], sizes = [2, 128], strides = [1, 1]} : vector<2x384xf32> to vector<2x128xf32>
    %483 = arith.mulf %472, %482 : vector<2x128xf32>
    %484 = arith.addf %481, %483 : vector<2x128xf32>
    %485 = math.tanh %484 : vector<2x128xf32>
    %cst_113 = arith.constant 1.000000e+00 : f32
    %486 = vector.broadcast %cst_113 : f32 to vector<2x128xf32>
    %487 = arith.subf %486, %480 : vector<2x128xf32>
    %488 = arith.mulf %487, %485 : vector<2x128xf32>
    %489 = arith.mulf %480, %454 : vector<2x128xf32>
    %490 = arith.addf %488, %489 : vector<2x128xf32>
    %c0_114 = arith.constant 0 : index
    %c0_115 = arith.constant 0 : index
    %491 = vector.load %arg11[%c0_114, %c0_115] : memref<1x128xf32, #tpu.memory_space<vmem>>, vector<1x128xf32>
    %492 = vector.broadcast %491 : vector<1x128xf32> to vector<2x128xf32>
    %493 = arith.mulf %490, %492 : vector<2x128xf32>
    %cst_116 = arith.constant dense<0.000000e+00> : vector<2xf32>
    %494 = vector.multi_reduction <add>, %493, %cst_116 [1] : vector<2x128xf32> to vector<2xf32>
    %495 = vector.shape_cast %494 : vector<2xf32> to vector<2x1xf32>
    %c0_117 = arith.constant 0 : index
    %c0_118 = arith.constant 0 : index
    %496 = vector.load %arg12[%c0_117, %c0_118] : memref<1x128xf32, #tpu.memory_space<vmem>>, vector<1x128xf32>
    %cst_119 = arith.constant dense<0.000000e+00> : vector<1x5xf32>
    %497 = tpu.matmul %496, %453, %cst_119 {dimension_numbers = #tpu.dot_dimension_numbers<[1], [1], [0], [0], [0, 0, 1, 0], [], []>} : vector<1x128xf32>, vector<5x128xf32>, vector<1x5xf32> -> vector<1x5xf32>
    %498 = vector.broadcast %495 : vector<2x1xf32> to vector<2x5xf32>
    %499 = vector.broadcast %497 : vector<1x5xf32> to vector<2x5xf32>
    %500 = arith.addf %498, %499 : vector<2x5xf32>
    %c0_120 = arith.constant 0 : index
    %c0_121 = arith.constant 0 : index
    %501 = vector.load %arg13[%c0_120, %c0_121] : memref<1x1xf32, #tpu.memory_space<vmem>>, vector<1x1xf32>
    %502 = vector.broadcast %501 : vector<1x1xf32> to vector<2x5xf32>
    %503 = arith.addf %500, %502 : vector<2x5xf32>
    %cst_122 = arith.constant 0.000000e+00 : f32
    %504 = vector.broadcast %cst_122 : f32 to vector<2x5xf32>
    %505 = arith.maximumf %503, %504 : vector<2x5xf32>
    %c0_123 = arith.constant 0 : index
    %c0_124 = arith.constant 0 : index
    %506 = vector.load %arg14[%c0_123, %c0_124] : memref<2x5xf32, #tpu.memory_space<vmem>>, vector<2x5xf32>
    tpu.vector_store %arg14[%c0_123, %c0_124], %505 {strides = array<i32>} : memref<2x5xf32, #tpu.memory_space<vmem>>, vector<2x5xf32>,
    %c0_125 = arith.constant 0 : index
    %c0_126 = arith.constant 0 : index
    %507 = vector.load %arg15[%c0_125, %c0_126] : memref<2x128xf32, #tpu.memory_space<vmem>>, vector<2x128xf32>
    tpu.vector_store %arg15[%c0_125, %c0_126], %490 {strides = array<i32>} : memref<2x128xf32, #tpu.memory_space<vmem>>, vector<2x128xf32>,
    return
  }
}

</mosaic_0001>

<llo_original>
// kernel: gru_network_forward.1
$region0: #{gru_network_forward.1}
  #allocation0 [shape = 'u32[]', space=smem, size = 0x4, offset = 0x4, fixed_abs, tag = 'smem constant byte address 0x4 - core index']
  #allocation1 [shape = 'u32[72,128]{1,0:T(1,128)}', space=vmem, size = 0x9000, scoped, tag = 'internal scratch']
  #allocation2 [shape = 'f32[1,1]{1,0:T(1,128)S(1)}', space=vmem, size = 0x200, scoped, tag = 'scoped memory for gru_network_forward.1']
  %s0 = inlined_call_operand.vmem [shape: f32[8,2,384], index: 0, kind: input, shape index: {}]
  %s1 = inlined_call_operand.vmem [shape: f32[6,5,384], index: 1, kind: input, shape index: {}]
  %s2 = inlined_call_operand.vmem [shape: f32[128,384], index: 2, kind: input, shape index: {}]
  %s3 = inlined_call_operand.vmem [shape: f32[1,384], index: 3, kind: input, shape index: {}]
  %s4 = inlined_call_operand.vmem [shape: f32[128,384], index: 4, kind: input, shape index: {}]
  %s5 = inlined_call_operand.vmem [shape: f32[1,384], index: 5, kind: input, shape index: {}]
  %s6 = inlined_call_operand.vmem [shape: f32[128,384], index: 6, kind: input, shape index: {}]
  %s7 = inlined_call_operand.vmem [shape: f32[1,384], index: 7, kind: input, shape index: {}]
  %s8 = inlined_call_operand.vmem [shape: f32[128,384], index: 8, kind: input, shape index: {}]
  %s9 = inlined_call_operand.vmem [shape: f32[1,384], index: 9, kind: input, shape index: {}]
  %s10 = inlined_call_operand.vmem [shape: f32[2,128], index: 10, kind: input, shape index: {}]
  %s11 = inlined_call_operand.vmem [shape: f32[1,128], index: 11, kind: input, shape index: {}]
  %s12 = inlined_call_operand.vmem [shape: f32[1,128], index: 12, kind: input, shape index: {}]
  %s13 = inlined_call_operand.<no memory space> [shape: f32[1,1], index: 13, kind: input, shape index: {}]
  %s14 = inlined_call_operand.vmem [shape: f32[2,5], index: 14, kind: output, shape index: {0}]
  %s15 = inlined_call_operand.vmem [shape: f32[2,128], index: 15, kind: output, shape index: {1}]
  %16 = xla_tuple %s14, %s15
  %s17 = sld [smem:[#allocation0]]
  $region74: #{gru_network_forward.1} parent=0
    _
  %s19 = ssub.s32 1, %s17
  %s20 = scalar_select 0, %s19, %s17
  %v21 = vstv %s13
  %22 = vst [vmem:[#allocation2] sm:$0x1] %v21
  // Predicated region
  $region2: #{gru_network_forward.1} parent=0 // pred_check
    _
  $region3: #{gru_network_forward.1} parent=0 // pred_check_branch
    %24 = sbr.rel (0) target = $region5
  $region4: #{gru_network_forward.1} parent=0 // pred_region
    _
  $region5: #{gru_network_forward.1} parent=0 // pred_fallthru
    _
  // Predicated region
  $region6: #{gru_network_forward.1} parent=0 // pred_check
    _
  $region7: #{gru_network_forward.1} parent=0 // pred_check_branch
    %26 = sbr.rel (0) target = $region9
  $region8: #{gru_network_forward.1} parent=0 // pred_region
    _
  $region9: #{gru_network_forward.1} parent=0 // pred_fallthru
    _
  // Predicated region
  $region10: #{gru_network_forward.1} parent=0 // pred_check
    _
  $region11: #{gru_network_forward.1} parent=0 // pred_check_branch
    %28 = sbr.rel (0) target = $region13
  $region12: #{gru_network_forward.1} parent=0 // pred_region
    _
  $region13: #{gru_network_forward.1} parent=0 // pred_fallthru
    _
  // Predicated region
  $region14: #{gru_network_forward.1} parent=0 // pred_check
    _
  $region15: #{gru_network_forward.1} parent=0 // pred_check_branch
    %30 = sbr.rel (0) target = $region17
  $region16: #{gru_network_forward.1} parent=0 // pred_region
    _
  $region17: #{gru_network_forward.1} parent=0 // pred_fallthru
    _
  // Predicated region
  $region18: #{gru_network_forward.1} parent=0 // pred_check
    _
  $region19: #{gru_network_forward.1} parent=0 // pred_check_branch
    %32 = sbr.rel (0) target = $region21
  $region20: #{gru_network_forward.1} parent=0 // pred_region
    _
  $region21: #{gru_network_forward.1} parent=0 // pred_fallthru
    _
  // Predicated region
  $region22: #{gru_network_forward.1} parent=0 // pred_check
    _
  $region23: #{gru_network_forward.1} parent=0 // pred_check_branch
    %34 = sbr.rel (0) target = $region25
  $region24: #{gru_network_forward.1} parent=0 // pred_region
    _
  $region25: #{gru_network_forward.1} parent=0 // pred_fallthru
    _
  // Predicated region
  $region26: #{gru_network_forward.1} parent=0 // pred_check
    _
  $region27: #{gru_network_forward.1} parent=0 // pred_check_branch
    %36 = sbr.rel (0) target = $region29
  $region28: #{gru_network_forward.1} parent=0 // pred_region
    _
  $region29: #{gru_network_forward.1} parent=0 // pred_fallthru
    _
  // Predicated region
  $region30: #{gru_network_forward.1} parent=0 // pred_check
    _
  $region31: #{gru_network_forward.1} parent=0 // pred_check_branch
    %38 = sbr.rel (0) target = $region33
  $region32: #{gru_network_forward.1} parent=0 // pred_region
    _
  $region33: #{gru_network_forward.1} parent=0 // pred_fallthru
    _
  // Predicated region
  $region34: #{gru_network_forward.1} parent=0 // pred_check
    _
  $region35: #{gru_network_forward.1} parent=0 // pred_check_branch
    %40 = sbr.rel (0) target = $region37
  $region36: #{gru_network_forward.1} parent=0 // pred_region
    _
  $region37: #{gru_network_forward.1} parent=0 // pred_fallthru
    _
  // Predicated region
  $region38: #{gru_network_forward.1} parent=0 // pred_check
    _
  $region39: #{gru_network_forward.1} parent=0 // pred_check_branch
    %42 = sbr.rel (0) target = $region41
  $region40: #{gru_network_forward.1} parent=0 // pred_region
    _
  $region41: #{gru_network_forward.1} parent=0 // pred_fallthru
    _
  // Predicated region
  $region42: #{gru_network_forward.1} parent=0 // pred_check
    _
  $region43: #{gru_network_forward.1} parent=0 // pred_check_branch
    %44 = sbr.rel (0) target = $region45
  $region44: #{gru_network_forward.1} parent=0 // pred_region
    _
  $region45: #{gru_network_forward.1} parent=0 // pred_fallthru
    _
  // Predicated region
  $region46: #{gru_network_forward.1} parent=0 // pred_check
    _
  $region47: #{gru_network_forward.1} parent=0 // pred_check_branch
    %46 = sbr.rel (0) target = $region49
  $region48: #{gru_network_forward.1} parent=0 // pred_region
    _
  $region49: #{gru_network_forward.1} parent=0 // pred_fallthru
    _
  // Predicated region
  $region50: #{gru_network_forward.1} parent=0 // pred_check
    _
  $region51: #{gru_network_forward.1} parent=0 // pred_check_branch
    %48 = sbr.rel (0) target = $region53
  $region52: #{gru_network_forward.1} parent=0 // pred_region
    _
  $region53: #{gru_network_forward.1} parent=0 // pred_fallthru
    _
  // Predicated region
  $region54: #{gru_network_forward.1} parent=0 // pred_check
    _
  $region55: #{gru_network_forward.1} parent=0 // pred_check_branch
    %50 = sbr.rel (0) target = $region57
  $region56: #{gru_network_forward.1} parent=0 // pred_region
    _
  $region57: #{gru_network_forward.1} parent=0 // pred_fallthru
    _
  %v51 = vld [vmem:[%s2] sm:$0xff]
  %v52 = vld [vmem:[%s2 + $0x8] sm:$0xff]
  %v53 = vld [vmem:[%s2 + $0x10] sm:$0xff]
  %v54 = vld [vmem:[%s2 + $0x18] sm:$0xff]
  %v55 = vld [vmem:[%s2 + $0x20] sm:$0xff]
  %v56 = vld [vmem:[%s2 + $0x28] sm:$0xff]
  %v57 = vld [vmem:[%s2 + $0x30] sm:$0xff]
  %v58 = vld [vmem:[%s2 + $0x38] sm:$0xff]
  %v59 = vld [vmem:[%s2 + $0x40] sm:$0xff]
  %v60 = vld [vmem:[%s2 + $0x48] sm:$0xff]
  %v61 = vld [vmem:[%s2 + $0x50] sm:$0xff]
  %v62 = vld [vmem:[%s2 + $0x58] sm:$0xff]
  %v63 = vld [vmem:[%s2 + $0x60] sm:$0xff]
  %v64 = vld [vmem:[%s2 + $0x68] sm:$0xff]
  %v65 = vld [vmem:[%s2 + $0x70] sm:$0xff]
  %v66 = vld [vmem:[%s2 + $0x78] sm:$0xff]
  %v67 = vld [vmem:[%s2 + $0x80] sm:$0xff]
  %v68 = vld [vmem:[%s2 + $0x88] sm:$0xff]
  %v69 = vld [vmem:[%s2 + $0x90] sm:$0xff]
  %v70 = vld [vmem:[%s2 + $0x98] sm:$0xff]
  %v71 = vld [vmem:[%s2 + $0xa0] sm:$0xff]
  %v72 = vld [vmem:[%s2 + $0xa8] sm:$0xff]
  %v73 = vld [vmem:[%s2 + $0xb0] sm:$0xff]
  %v74 = vld [vmem:[%s2 + $0xb8] sm:$0xff]
  %v75 = vld [vmem:[%s2 + $0xc0] sm:$0xff]
  %v76 = vld [vmem:[%s2 + $0xc8] sm:$0xff]
  %v77 = vld [vmem:[%s2 + $0xd0] sm:$0xff]
  %v78 = vld [vmem:[%s2 + $0xd8] sm:$0xff]
  %v79 = vld [vmem:[%s2 + $0xe0] sm:$0xff]
  %v80 = vld [vmem:[%s2 + $0xe8] sm:$0xff]
  %v81 = vld [vmem:[%s2 + $0xf0] sm:$0xff]
  %v82 = vld [vmem:[%s2 + $0xf8] sm:$0xff]
  %v83 = vld [vmem:[%s2 + $0x100] sm:$0xff]
  %v84 = vld [vmem:[%s2 + $0x108] sm:$0xff]
  %v85 = vld [vmem:[%s2 + $0x110] sm:$0xff]
  %v86 = vld [vmem:[%s2 + $0x118] sm:$0xff]
  %v87 = vld [vmem:[%s2 + $0x120] sm:$0xff]
  %v88 = vld [vmem:[%s2 + $0x128] sm:$0xff]
  %v89 = vld [vmem:[%s2 + $0x130] sm:$0xff]
  %v90 = vld [vmem:[%s2 + $0x138] sm:$0xff]
  %v91 = vld [vmem:[%s2 + $0x140] sm:$0xff]
  %v92 = vld [vmem:[%s2 + $0x148] sm:$0xff]
  %v93 = vld [vmem:[%s2 + $0x150] sm:$0xff]
  %v94 = vld [vmem:[%s2 + $0x158] sm:$0xff]
  %v95 = vld [vmem:[%s2 + $0x160] sm:$0xff]
  %v96 = vld [vmem:[%s2 + $0x168] sm:$0xff]
  %v97 = vld [vmem:[%s2 + $0x170] sm:$0xff]
  %v98 = vld [vmem:[%s2 + $0x178] sm:$0xff]
  %v99 = vld [vmem:[%s3] sm:$0x7]
  %v100 = vld [vmem:[%s0] sm:$0x3f]
  %v102 = vperm.slane %v99, 0
  %v103 = vperm.slane %v99, 1
  %v104 = vperm.slane %v99, 2
  %108 = vmatpush.msra.mxu0 %v96
  %109 = vmatpush.msra.mxu0 %v93
  %110 = vmatpush.msra.mxu0 %v90
  %111 = vmatpush.msra.mxu0 %v87
  %112 = vmatpush.msra.mxu0 %v84
  %113 = vmatpush.msra.mxu0 %v81
  %114 = vmatpush.msra.mxu0 %v78
  %115 = vmatpush.msra.mxu0 %v75
  %116 = vmatpush.msra.mxu0 %v72
  %117 = vmatpush.msra.mxu0 %v69
  %118 = vmatpush.msra.mxu0 %v66
  %119 = vmatpush.msra.mxu0 %v63
  %120 = vmatpush.msra.mxu0 %v60
  %121 = vmatpush.msra.mxu0 %v57
  %122 = vmatpush.msra.mxu0 %v54
  %123 = vmatpush.msra.mxu0 %v51
  %124 = vmatmul.f32.gmra.mxu0 0.0
  %v125 = vpop.f32.mrf.mxu0
  %v126 = vadd.f32 %v102, %v125
  %127 = vdwg.mxu0
  %128 = vmatpush.msra.mxu0 %v97
  %129 = vmatpush.msra.mxu0 %v94
  %130 = vmatpush.msra.mxu0 %v91
  %131 = vmatpush.msra.mxu0 %v88
  %132 = vmatpush.msra.mxu0 %v85
  %133 = vmatpush.msra.mxu0 %v82
  %134 = vmatpush.msra.mxu0 %v79
  %135 = vmatpush.msra.mxu0 %v76
  %136 = vmatpush.msra.mxu0 %v73
  %137 = vmatpush.msra.mxu0 %v70
  %138 = vmatpush.msra.mxu0 %v67
  %139 = vmatpush.msra.mxu0 %v64
  %140 = vmatpush.msra.mxu0 %v61
  %141 = vmatpush.msra.mxu0 %v58
  %142 = vmatpush.msra.mxu0 %v55
  %143 = vmatpush.msra.mxu0 %v52
  %144 = vmatmul.f32.gmra.mxu0 0.0
  %v145 = vpop.f32.mrf.mxu0
  %v146 = vadd.f32 %v103, %v145
  %147 = vdwg.mxu0
  %148 = vmatpush.msra.mxu0 %v98
  %149 = vmatpush.msra.mxu0 %v95
  %150 = vmatpush.msra.mxu0 %v92
  %151 = vmatpush.msra.mxu0 %v89
  %152 = vmatpush.msra.mxu0 %v86
  %153 = vmatpush.msra.mxu0 %v83
  %154 = vmatpush.msra.mxu0 %v80
  %155 = vmatpush.msra.mxu0 %v77
  %156 = vmatpush.msra.mxu0 %v74
  %157 = vmatpush.msra.mxu0 %v71
  %158 = vmatpush.msra.mxu0 %v68
  %159 = vmatpush.msra.mxu0 %v65
  %160 = vmatpush.msra.mxu0 %v62
  %161 = vmatpush.msra.mxu0 %v59
  %162 = vmatpush.msra.mxu0 %v56
  %163 = vmatpush.msra.mxu0 %v53
  %164 = vmatmul.f32.gmra.mxu0 0.0
  %v165 = vpop.f32.mrf.mxu0
  %v166 = vadd.f32 %v104, %v165
  %167 = vdwg.mxu0
  %v168 = vadd.f32 %v100, %v126
  %v169 = vxor.u32 %v168, 2147483648
  %v170 = vmul.f32 %v169, 1.442695
  %v171 = vpow.pop %v170
  %v172 = vadd.f32 %v171, 1.0
  %v173 = vrcp.pop %v172
  %v174 = vmul.f32 %v172, %v173
  %v175 = vsub.f32 1.0, %v174
  %v176 = vmul.f32 %v173, %v175
  %v177 = vadd.f32 %v173, %v176
  %vm178 = vweird.f32 %v172
  %vm179 = vweird.f32 %v173
  %vm180 = vmor %vm178, %vm179
  %v181 = vsel %vm180, %v173, %v177
  %v182 = vand.u32 2147483647, %v172
  %vm183 = vcmp.eq.f32.partialorder %v182, 8.507059e+37
  %v184 = vand.u32 %v172, 2147483648
  %v185 = vor.u32 1.1754944e-38, %v184
  %v186 = vsel %vm183, %v185, %v181
  %v187 = vmul.f32 1.0, %v186
  %v189 = vrot.slane %v100, 2
  %v191 = vadd.f32 %v189, %v146
  %v192 = vxor.u32 %v191, 2147483648
  %v193 = vmul.f32 %v192, 1.442695
  %v194 = vpow.pop %v193
  %v195 = vadd.f32 %v194, 1.0
  %v196 = vrcp.pop %v195
  %v197 = vmul.f32 %v195, %v196
  %v198 = vsub.f32 1.0, %v197
  %v199 = vmul.f32 %v196, %v198
  %v200 = vadd.f32 %v196, %v199
  %vm201 = vweird.f32 %v195
  %vm202 = vweird.f32 %v196
  %vm203 = vmor %vm201, %vm202
  %v204 = vsel %vm203, %v196, %v200
  %v205 = vand.u32 2147483647, %v195
  %vm206 = vcmp.eq.f32.partialorder %v205, 8.507059e+37
  %v207 = vand.u32 %v195, 2147483648
  %v208 = vor.u32 1.1754944e-38, %v207
  %v209 = vsel %vm206, %v208, %v204
  %v210 = vmul.f32 1.0, %v209
  %v211 = vmul.f32 %v187, %v166
  %v212 = vrot.slane %v100, 4
  %v214 = vadd.f32 %v212, %v211
  %v215 = vtanh.pop %v214
  %v216 = vsub.f32 1.0, %v210
  %v217 = vmul.f32 %v216, %v215
  %v218 = vmul.f32 %v210, 0.0
  %v219 = vadd.f32 %v217, %v218
  %s220 = scalar_lea.vmem %s0, 6
  %v221 = vld [vmem:[%s220] sm:$0x3f]
  %222 = vmatpush.msra.mxu0 %v96
  %223 = vmatpush.msra.mxu0 %v93
  %224 = vmatpush.msra.mxu0 %v90
  %225 = vmatpush.msra.mxu0 %v87
  %226 = vmatpush.msra.mxu0 %v84
  %227 = vmatpush.msra.mxu0 %v81
  %228 = vmatpush.msra.mxu0 %v78
  %229 = vmatpush.msra.mxu0 %v75
  %230 = vmatpush.msra.mxu0 %v72
  %231 = vmatpush.msra.mxu0 %v69
  %232 = vmatpush.msra.mxu0 %v66
  %233 = vmatpush.msra.mxu0 %v63
  %234 = vmatpush.msra.mxu0 %v60
  %235 = vmatpush.msra.mxu0 %v57
  %236 = vmatpush.msra.mxu0 %v54
  %237 = vmatpush.msra.mxu0 %v51
  %238 = vmatmul.f32.gmra.mxu0 %v219
  %v239 = vpop.f32.mrf.mxu0
  %v240 = vadd.f32 %v102, %v239
  %241 = vdwg.mxu0
  %242 = vmatpush.msra.mxu0 %v97
  %243 = vmatpush.msra.mxu0 %v94
  %244 = vmatpush.msra.mxu0 %v91
  %245 = vmatpush.msra.mxu0 %v88
  %246 = vmatpush.msra.mxu0 %v85
  %247 = vmatpush.msra.mxu0 %v82
  %248 = vmatpush.msra.mxu0 %v79
  %249 = vmatpush.msra.mxu0 %v76
  %250 = vmatpush.msra.mxu0 %v73
  %251 = vmatpush.msra.mxu0 %v70
  %252 = vmatpush.msra.mxu0 %v67
  %253 = vmatpush.msra.mxu0 %v64
  %254 = vmatpush.msra.mxu0 %v61
  %255 = vmatpush.msra.mxu0 %v58
  %256 = vmatpush.msra.mxu0 %v55
  %257 = vmatpush.msra.mxu0 %v52
  %258 = vmatmul.f32.gmra.mxu0 %v219
  %v259 = vpop.f32.mrf.mxu0
  %v260 = vadd.f32 %v103, %v259
  %261 = vdwg.mxu0
  %262 = vmatpush.msra.mxu0 %v98
  %263 = vmatpush.msra.mxu0 %v95
  %264 = vmatpush.msra.mxu0 %v92
  %265 = vmatpush.msra.mxu0 %v89
  %266 = vmatpush.msra.mxu0 %v86
  %267 = vmatpush.msra.mxu0 %v83
  %268 = vmatpush.msra.mxu0 %v80
  %269 = vmatpush.msra.mxu0 %v77
  %270 = vmatpush.msra.mxu0 %v74
  %271 = vmatpush.msra.mxu0 %v71
  %272 = vmatpush.msra.mxu0 %v68
  %273 = vmatpush.msra.mxu0 %v65
  %274 = vmatpush.msra.mxu0 %v62
  %275 = vmatpush.msra.mxu0 %v59
  %276 = vmatpush.msra.mxu0 %v56
  %277 = vmatpush.msra.mxu0 %v53
  %278 = vmatmul.f32.gmra.mxu0 %v219
  %v279 = vpop.f32.mrf.mxu0
  %v280 = vadd.f32 %v104, %v279
  %281 = vdwg.mxu0
  %v282 = vadd.f32 %v221, %v240
  %v283 = vxor.u32 %v282, 2147483648
  %v284 = vmul.f32 %v283, 1.442695
  %v285 = vpow.pop %v284
  %v286 = vadd.f32 %v285, 1.0
  %v287 = vrcp.pop %v286
  %v288 = vmul.f32 %v286, %v287
  %v289 = vsub.f32 1.0, %v288
  %v290 = vmul.f32 %v287, %v289
  %v291 = vadd.f32 %v287, %v290
  %vm292 = vweird.f32 %v286
  %vm293 = vweird.f32 %v287
  %vm294 = vmor %vm292, %vm293
  %v295 = vsel %vm294, %v287, %v291
  %v296 = vand.u32 2147483647, %v286
  %vm297 = vcmp.eq.f32.partialorder %v296, 8.507059e+37
  %v298 = vand.u32 %v286, 2147483648
  %v299 = vor.u32 1.1754944e-38, %v298
  %v300 = vsel %vm297, %v299, %v295
  %v301 = vmul.f32 1.0, %v300
  %v303 = vrot.slane %v221, 2
  %v305 = vadd.f32 %v303, %v260
  %v306 = vxor.u32 %v305, 2147483648
  %v307 = vmul.f32 %v306, 1.442695
  %v308 = vpow.pop %v307
  %v309 = vadd.f32 %v308, 1.0
  %v310 = vrcp.pop %v309
  %v311 = vmul.f32 %v309, %v310
  %v312 = vsub.f32 1.0, %v311
  %v313 = vmul.f32 %v310, %v312
  %v314 = vadd.f32 %v310, %v313
  %vm315 = vweird.f32 %v309
  %vm316 = vweird.f32 %v310
  %vm317 = vmor %vm315, %vm316
  %v318 = vsel %vm317, %v310, %v314
  %v319 = vand.u32 2147483647, %v309
  %vm320 = vcmp.eq.f32.partialorder %v319, 8.507059e+37
  %v321 = vand.u32 %v309, 2147483648
  %v322 = vor.u32 1.1754944e-38, %v321
  %v323 = vsel %vm320, %v322, %v318
  %v324 = vmul.f32 1.0, %v323
  %v325 = vmul.f32 %v301, %v280
  %v326 = vrot.slane %v221, 4
  %v328 = vadd.f32 %v326, %v325
  %v329 = vtanh.pop %v328
  %v330 = vsub.f32 1.0, %v324
  %v331 = vmul.f32 %v330, %v329
  %v332 = vmul.f32 %v324, %v219
  %v333 = vadd.f32 %v331, %v332
  %s334 = scalar_lea.vmem %s0, 12
  %v335 = vld [vmem:[%s334] sm:$0x3f]
  %336 = vmatpush.msra.mxu0 %v96
  %337 = vmatpush.msra.mxu0 %v93
  %338 = vmatpush.msra.mxu0 %v90
  %339 = vmatpush.msra.mxu0 %v87
  %340 = vmatpush.msra.mxu0 %v84
  %341 = vmatpush.msra.mxu0 %v81
  %342 = vmatpush.msra.mxu0 %v78
  %343 = vmatpush.msra.mxu0 %v75
  %344 = vmatpush.msra.mxu0 %v72
  %345 = vmatpush.msra.mxu0 %v69
  %346 = vmatpush.msra.mxu0 %v66
  %347 = vmatpush.msra.mxu0 %v63
  %348 = vmatpush.msra.mxu0 %v60
  %349 = vmatpush.msra.mxu0 %v57
  %350 = vmatpush.msra.mxu0 %v54
  %351 = vmatpush.msra.mxu0 %v51
  %352 = vmatmul.f32.gmra.mxu0 %v333
  %v353 = vpop.f32.mrf.mxu0
  %v354 = vadd.f32 %v102, %v353
  %355 = vdwg.mxu0
  %356 = vmatpush.msra.mxu0 %v97
  %357 = vmatpush.msra.mxu0 %v94
  %358 = vmatpush.msra.mxu0 %v91
  %359 = vmatpush.msra.mxu0 %v88
  %360 = vmatpush.msra.mxu0 %v85
  %361 = vmatpush.msra.mxu0 %v82
  %362 = vmatpush.msra.mxu0 %v79
  %363 = vmatpush.msra.mxu0 %v76
  %364 = vmatpush.msra.mxu0 %v73
  %365 = vmatpush.msra.mxu0 %v70
  %366 = vmatpush.msra.mxu0 %v67
  %367 = vmatpush.msra.mxu0 %v64
  %368 = vmatpush.msra.mxu0 %v61
  %369 = vmatpush.msra.mxu0 %v58
  %370 = vmatpush.msra.mxu0 %v55
  %371 = vmatpush.msra.mxu0 %v52
  %372 = vmatmul.f32.gmra.mxu0 %v333
  %v373 = vpop.f32.mrf.mxu0
  %v374 = vadd.f32 %v103, %v373
  %375 = vdwg.mxu0
  %376 = vmatpush.msra.mxu0 %v98
  %377 = vmatpush.msra.mxu0 %v95
  %378 = vmatpush.msra.mxu0 %v92
  %379 = vmatpush.msra.mxu0 %v89
  %380 = vmatpush.msra.mxu0 %v86
  %381 = vmatpush.msra.mxu0 %v83
  %382 = vmatpush.msra.mxu0 %v80
  %383 = vmatpush.msra.mxu0 %v77
  %384 = vmatpush.msra.mxu0 %v74
  %385 = vmatpush.msra.mxu0 %v71
  %386 = vmatpush.msra.mxu0 %v68
  %387 = vmatpush.msra.mxu0 %v65
  %388 = vmatpush.msra.mxu0 %v62
  %389 = vmatpush.msra.mxu0 %v59
  %390 = vmatpush.msra.mxu0 %v56
  %391 = vmatpush.msra.mxu0 %v53
  %392 = vmatmul.f32.gmra.mxu0 %v333
  %v393 = vpop.f32.mrf.mxu0
  %v394 = vadd.f32 %v104, %v393
  %395 = vdwg.mxu0
  %v396 = vadd.f32 %v335, %v354
  %v397 = vxor.u32 %v396, 2147483648
  %v398 = vmul.f32 %v397, 1.442695
  %v399 = vpow.pop %v398
  %v400 = vadd.f32 %v399, 1.0
  %v401 = vrcp.pop %v400
  %v402 = vmul.f32 %v400, %v401
  %v403 = vsub.f32 1.0, %v402
  %v404 = vmul.f32 %v401, %v403
  %v405 = vadd.f32 %v401, %v404
  %vm406 = vweird.f32 %v400
  %vm407 = vweird.f32 %v401
  %vm408 = vmor %vm406, %vm407
  %v409 = vsel %vm408, %v401, %v405
  %v410 = vand.u32 2147483647, %v400
  %vm411 = vcmp.eq.f32.partialorder %v410, 8.507059e+37
  %v412 = vand.u32 %v400, 2147483648
  %v413 = vor.u32 1.1754944e-38, %v412
  %v414 = vsel %vm411, %v413, %v409
  %v415 = vmul.f32 1.0, %v414
  %v417 = vrot.slane %v335, 2
  %v419 = vadd.f32 %v417, %v374
  %v420 = vxor.u32 %v419, 2147483648
  %v421 = vmul.f32 %v420, 1.442695
  %v422 = vpow.pop %v421
  %v423 = vadd.f32 %v422, 1.0
  %v424 = vrcp.pop %v423
  %v425 = vmul.f32 %v423, %v424
  %v426 = vsub.f32 1.0, %v425
  %v427 = vmul.f32 %v424, %v426
  %v428 = vadd.f32 %v424, %v427
  %vm429 = vweird.f32 %v423
  %vm430 = vweird.f32 %v424
  %vm431 = vmor %vm429, %vm430
  %v432 = vsel %vm431, %v424, %v428
  %v433 = vand.u32 2147483647, %v423
  %vm434 = vcmp.eq.f32.partialorder %v433, 8.507059e+37
  %v435 = vand.u32 %v423, 2147483648
  %v436 = vor.u32 1.1754944e-38, %v435
  %v437 = vsel %vm434, %v436, %v432
  %v438 = vmul.f32 1.0, %v437
  %v439 = vmul.f32 %v415, %v394
  %v440 = vrot.slane %v335, 4
  %v442 = vadd.f32 %v440, %v439
  %v443 = vtanh.pop %v442
  %v444 = vsub.f32 1.0, %v438
  %v445 = vmul.f32 %v444, %v443
  %v446 = vmul.f32 %v438, %v333
  %v447 = vadd.f32 %v445, %v446
  %s448 = scalar_lea.vmem %s0, 18
  %v449 = vld [vmem:[%s448] sm:$0x3f]
  %450 = vmatpush.msra.mxu0 %v96
  %451 = vmatpush.msra.mxu0 %v93
  %452 = vmatpush.msra.mxu0 %v90
  %453 = vmatpush.msra.mxu0 %v87
  %454 = vmatpush.msra.mxu0 %v84
  %455 = vmatpush.msra.mxu0 %v81
  %456 = vmatpush.msra.mxu0 %v78
  %457 = vmatpush.msra.mxu0 %v75
  %458 = vmatpush.msra.mxu0 %v72
  %459 = vmatpush.msra.mxu0 %v69
  %460 = vmatpush.msra.mxu0 %v66
  %461 = vmatpush.msra.mxu0 %v63
  %462 = vmatpush.msra.mxu0 %v60
  %463 = vmatpush.msra.mxu0 %v57
  %464 = vmatpush.msra.mxu0 %v54
  %465 = vmatpush.msra.mxu0 %v51
  %466 = vmatmul.f32.gmra.mxu0 %v447
  %v467 = vpop.f32.mrf.mxu0
  %v468 = vadd.f32 %v102, %v467
  %469 = vdwg.mxu0
  %470 = vmatpush.msra.mxu0 %v97
  %471 = vmatpush.msra.mxu0 %v94
  %472 = vmatpush.msra.mxu0 %v91
  %473 = vmatpush.msra.mxu0 %v88
  %474 = vmatpush.msra.mxu0 %v85
  %475 = vmatpush.msra.mxu0 %v82
  %476 = vmatpush.msra.mxu0 %v79
  %477 = vmatpush.msra.mxu0 %v76
  %478 = vmatpush.msra.mxu0 %v73
  %479 = vmatpush.msra.mxu0 %v70
  %480 = vmatpush.msra.mxu0 %v67
  %481 = vmatpush.msra.mxu0 %v64
  %482 = vmatpush.msra.mxu0 %v61
  %483 = vmatpush.msra.mxu0 %v58
  %484 = vmatpush.msra.mxu0 %v55
  %485 = vmatpush.msra.mxu0 %v52
  %486 = vmatmul.f32.gmra.mxu0 %v447
  %v487 = vpop.f32.mrf.mxu0
  %v488 = vadd.f32 %v103, %v487
  %489 = vdwg.mxu0
  %490 = vmatpush.msra.mxu0 %v98
  %491 = vmatpush.msra.mxu0 %v95
  %492 = vmatpush.msra.mxu0 %v92
  %493 = vmatpush.msra.mxu0 %v89
  %494 = vmatpush.msra.mxu0 %v86
  %495 = vmatpush.msra.mxu0 %v83
  %496 = vmatpush.msra.mxu0 %v80
  %497 = vmatpush.msra.mxu0 %v77
  %498 = vmatpush.msra.mxu0 %v74
  %499 = vmatpush.msra.mxu0 %v71
  %500 = vmatpush.msra.mxu0 %v68
  %501 = vmatpush.msra.mxu0 %v65
  %502 = vmatpush.msra.mxu0 %v62
  %503 = vmatpush.msra.mxu0 %v59
  %504 = vmatpush.msra.mxu0 %v56
  %505 = vmatpush.msra.mxu0 %v53
  %506 = vmatmul.f32.gmra.mxu0 %v447
  %v507 = vpop.f32.mrf.mxu0
  %v508 = vadd.f32 %v104, %v507
  %509 = vdwg.mxu0
  %v510 = vadd.f32 %v449, %v468
  %v511 = vxor.u32 %v510, 2147483648
  %v512 = vmul.f32 %v511, 1.442695
  %v513 = vpow.pop %v512
  %v514 = vadd.f32 %v513, 1.0
  %v515 = vrcp.pop %v514
  %v516 = vmul.f32 %v514, %v515
  %v517 = vsub.f32 1.0, %v516
  %v518 = vmul.f32 %v515, %v517
  %v519 = vadd.f32 %v515, %v518
  %vm520 = vweird.f32 %v514
  %vm521 = vweird.f32 %v515
  %vm522 = vmor %vm520, %vm521
  %v523 = vsel %vm522, %v515, %v519
  %v524 = vand.u32 2147483647, %v514
  %vm525 = vcmp.eq.f32.partialorder %v524, 8.507059e+37
  %v526 = vand.u32 %v514, 2147483648
  %v527 = vor.u32 1.1754944e-38, %v526
  %v528 = vsel %vm525, %v527, %v523
  %v529 = vmul.f32 1.0, %v528
  %v531 = vrot.slane %v449, 2
  %v533 = vadd.f32 %v531, %v488
  %v534 = vxor.u32 %v533, 2147483648
  %v535 = vmul.f32 %v534, 1.442695
  %v536 = vpow.pop %v535
  %v537 = vadd.f32 %v536, 1.0
  %v538 = vrcp.pop %v537
  %v539 = vmul.f32 %v537, %v538
  %v540 = vsub.f32 1.0, %v539
  %v541 = vmul.f32 %v538, %v540
  %v542 = vadd.f32 %v538, %v541
  %vm543 = vweird.f32 %v537
  %vm544 = vweird.f32 %v538
  %vm545 = vmor %vm543, %vm544
  %v546 = vsel %vm545, %v538, %v542
  %v547 = vand.u32 2147483647, %v537
  %vm548 = vcmp.eq.f32.partialorder %v547, 8.507059e+37
  %v549 = vand.u32 %v537, 2147483648
  %v550 = vor.u32 1.1754944e-38, %v549
  %v551 = vsel %vm548, %v550, %v546
  %v552 = vmul.f32 1.0, %v551
  %v553 = vmul.f32 %v529, %v508
  %v554 = vrot.slane %v449, 4
  %v556 = vadd.f32 %v554, %v553
  %v557 = vtanh.pop %v556
  %v558 = vsub.f32 1.0, %v552
  %v559 = vmul.f32 %v558, %v557
  %v560 = vmul.f32 %v552, %v447
  %v561 = vadd.f32 %v559, %v560
  %s562 = scalar_lea.vmem %s0, 24
  %v563 = vld [vmem:[%s562] sm:$0x3f]
  %564 = vmatpush.msra.mxu0 %v96
  %565 = vmatpush.msra.mxu0 %v93
  %566 = vmatpush.msra.mxu0 %v90
  %567 = vmatpush.msra.mxu0 %v87
  %568 = vmatpush.msra.mxu0 %v84
  %569 = vmatpush.msra.mxu0 %v81
  %570 = vmatpush.msra.mxu0 %v78
  %571 = vmatpush.msra.mxu0 %v75
  %572 = vmatpush.msra.mxu0 %v72
  %573 = vmatpush.msra.mxu0 %v69
  %574 = vmatpush.msra.mxu0 %v66
  %575 = vmatpush.msra.mxu0 %v63
  %576 = vmatpush.msra.mxu0 %v60
  %577 = vmatpush.msra.mxu0 %v57
  %578 = vmatpush.msra.mxu0 %v54
  %579 = vmatpush.msra.mxu0 %v51
  %580 = vmatmul.f32.gmra.mxu0 %v561
  %v581 = vpop.f32.mrf.mxu0
  %v582 = vadd.f32 %v102, %v581
  %583 = vdwg.mxu0
  %584 = vmatpush.msra.mxu0 %v97
  %585 = vmatpush.msra.mxu0 %v94
  %586 = vmatpush.msra.mxu0 %v91
  %587 = vmatpush.msra.mxu0 %v88
  %588 = vmatpush.msra.mxu0 %v85
  %589 = vmatpush.msra.mxu0 %v82
  %590 = vmatpush.msra.mxu0 %v79
  %591 = vmatpush.msra.mxu0 %v76
  %592 = vmatpush.msra.mxu0 %v73
  %593 = vmatpush.msra.mxu0 %v70
  %594 = vmatpush.msra.mxu0 %v67
  %595 = vmatpush.msra.mxu0 %v64
  %596 = vmatpush.msra.mxu0 %v61
  %597 = vmatpush.msra.mxu0 %v58
  %598 = vmatpush.msra.mxu0 %v55
  %599 = vmatpush.msra.mxu0 %v52
  %600 = vmatmul.f32.gmra.mxu0 %v561
  %v601 = vpop.f32.mrf.mxu0
  %v602 = vadd.f32 %v103, %v601
  %603 = vdwg.mxu0
  %604 = vmatpush.msra.mxu0 %v98
  %605 = vmatpush.msra.mxu0 %v95
  %606 = vmatpush.msra.mxu0 %v92
  %607 = vmatpush.msra.mxu0 %v89
  %608 = vmatpush.msra.mxu0 %v86
  %609 = vmatpush.msra.mxu0 %v83
  %610 = vmatpush.msra.mxu0 %v80
  %611 = vmatpush.msra.mxu0 %v77
  %612 = vmatpush.msra.mxu0 %v74
  %613 = vmatpush.msra.mxu0 %v71
  %614 = vmatpush.msra.mxu0 %v68
  %615 = vmatpush.msra.mxu0 %v65
  %616 = vmatpush.msra.mxu0 %v62
  %617 = vmatpush.msra.mxu0 %v59
  %618 = vmatpush.msra.mxu0 %v56
  %619 = vmatpush.msra.mxu0 %v53
  %620 = vmatmul.f32.gmra.mxu0 %v561
  %v621 = vpop.f32.mrf.mxu0
  %v622 = vadd.f32 %v104, %v621
  %623 = vdwg.mxu0
  %v624 = vadd.f32 %v563, %v582
  %v625 = vxor.u32 %v624, 2147483648
  %v626 = vmul.f32 %v625, 1.442695
  %v627 = vpow.pop %v626
  %v628 = vadd.f32 %v627, 1.0
  %v629 = vrcp.pop %v628
  %v630 = vmul.f32 %v628, %v629
  %v631 = vsub.f32 1.0, %v630
  %v632 = vmul.f32 %v629, %v631
  %v633 = vadd.f32 %v629, %v632
  %vm634 = vweird.f32 %v628
  %vm635 = vweird.f32 %v629
  %vm636 = vmor %vm634, %vm635
  %v637 = vsel %vm636, %v629, %v633
  %v638 = vand.u32 2147483647, %v628
  %vm639 = vcmp.eq.f32.partialorder %v638, 8.507059e+37
  %v640 = vand.u32 %v628, 2147483648
  %v641 = vor.u32 1.1754944e-38, %v640
  %v642 = vsel %vm639, %v641, %v637
  %v643 = vmul.f32 1.0, %v642
  %v645 = vrot.slane %v563, 2
  %v647 = vadd.f32 %v645, %v602
  %v648 = vxor.u32 %v647, 2147483648
  %v649 = vmul.f32 %v648, 1.442695
  %v650 = vpow.pop %v649
  %v651 = vadd.f32 %v650, 1.0
  %v652 = vrcp.pop %v651
  %v653 = vmul.f32 %v651, %v652
  %v654 = vsub.f32 1.0, %v653
  %v655 = vmul.f32 %v652, %v654
  %v656 = vadd.f32 %v652, %v655
  %vm657 = vweird.f32 %v651
  %vm658 = vweird.f32 %v652
  %vm659 = vmor %vm657, %vm658
  %v660 = vsel %vm659, %v652, %v656
  %v661 = vand.u32 2147483647, %v651
  %vm662 = vcmp.eq.f32.partialorder %v661, 8.507059e+37
  %v663 = vand.u32 %v651, 2147483648
  %v664 = vor.u32 1.1754944e-38, %v663
  %v665 = vsel %vm662, %v664, %v660
  %v666 = vmul.f32 1.0, %v665
  %v667 = vmul.f32 %v643, %v622
  %v668 = vrot.slane %v563, 4
  %v670 = vadd.f32 %v668, %v667
  %v671 = vtanh.pop %v670
  %v672 = vsub.f32 1.0, %v666
  %v673 = vmul.f32 %v672, %v671
  %v674 = vmul.f32 %v666, %v561
  %v675 = vadd.f32 %v673, %v674
  %s676 = scalar_lea.vmem %s0, 30
  %v677 = vld [vmem:[%s676] sm:$0x3f]
  %678 = vmatpush.msra.mxu0 %v96
  %679 = vmatpush.msra.mxu0 %v93
  %680 = vmatpush.msra.mxu0 %v90
  %681 = vmatpush.msra.mxu0 %v87
  %682 = vmatpush.msra.mxu0 %v84
  %683 = vmatpush.msra.mxu0 %v81
  %684 = vmatpush.msra.mxu0 %v78
  %685 = vmatpush.msra.mxu0 %v75
  %686 = vmatpush.msra.mxu0 %v72
  %687 = vmatpush.msra.mxu0 %v69
  %688 = vmatpush.msra.mxu0 %v66
  %689 = vmatpush.msra.mxu0 %v63
  %690 = vmatpush.msra.mxu0 %v60
  %691 = vmatpush.msra.mxu0 %v57
  %692 = vmatpush.msra.mxu0 %v54
  %693 = vmatpush.msra.mxu0 %v51
  %694 = vmatmul.f32.gmra.mxu0 %v675
  %v695 = vpop.f32.mrf.mxu0
  %v696 = vadd.f32 %v102, %v695
  %697 = vdwg.mxu0
  %698 = vmatpush.msra.mxu0 %v97
  %699 = vmatpush.msra.mxu0 %v94
  %700 = vmatpush.msra.mxu0 %v91
  %701 = vmatpush.msra.mxu0 %v88
  %702 = vmatpush.msra.mxu0 %v85
  %703 = vmatpush.msra.mxu0 %v82
  %704 = vmatpush.msra.mxu0 %v79
  %705 = vmatpush.msra.mxu0 %v76
  %706 = vmatpush.msra.mxu0 %v73
  %707 = vmatpush.msra.mxu0 %v70
  %708 = vmatpush.msra.mxu0 %v67
  %709 = vmatpush.msra.mxu0 %v64
  %710 = vmatpush.msra.mxu0 %v61
  %711 = vmatpush.msra.mxu0 %v58
  %712 = vmatpush.msra.mxu0 %v55
  %713 = vmatpush.msra.mxu0 %v52
  %714 = vmatmul.f32.gmra.mxu0 %v675
  %v715 = vpop.f32.mrf.mxu0
  %v716 = vadd.f32 %v103, %v715
  %717 = vdwg.mxu0
  %718 = vmatpush.msra.mxu0 %v98
  %719 = vmatpush.msra.mxu0 %v95
  %720 = vmatpush.msra.mxu0 %v92
  %721 = vmatpush.msra.mxu0 %v89
  %722 = vmatpush.msra.mxu0 %v86
  %723 = vmatpush.msra.mxu0 %v83
  %724 = vmatpush.msra.mxu0 %v80
  %725 = vmatpush.msra.mxu0 %v77
  %726 = vmatpush.msra.mxu0 %v74
  %727 = vmatpush.msra.mxu0 %v71
  %728 = vmatpush.msra.mxu0 %v68
  %729 = vmatpush.msra.mxu0 %v65
  %730 = vmatpush.msra.mxu0 %v62
  %731 = vmatpush.msra.mxu0 %v59
  %732 = vmatpush.msra.mxu0 %v56
  %733 = vmatpush.msra.mxu0 %v53
  %734 = vmatmul.f32.gmra.mxu0 %v675
  %v735 = vpop.f32.mrf.mxu0
  %v736 = vadd.f32 %v104, %v735
  %737 = vdwg.mxu0
  %v738 = vadd.f32 %v677, %v696
  %v739 = vxor.u32 %v738, 2147483648
  %v740 = vmul.f32 %v739, 1.442695
  %v741 = vpow.pop %v740
  %v742 = vadd.f32 %v741, 1.0
  %v743 = vrcp.pop %v742
  %v744 = vmul.f32 %v742, %v743
  %v745 = vsub.f32 1.0, %v744
  %v746 = vmul.f32 %v743, %v745
  %v747 = vadd.f32 %v743, %v746
  %vm748 = vweird.f32 %v742
  %vm749 = vweird.f32 %v743
  %vm750 = vmor %vm748, %vm749
  %v751 = vsel %vm750, %v743, %v747
  %v752 = vand.u32 2147483647, %v742
  %vm753 = vcmp.eq.f32.partialorder %v752, 8.507059e+37
  %v754 = vand.u32 %v742, 2147483648
  %v755 = vor.u32 1.1754944e-38, %v754
  %v756 = vsel %vm753, %v755, %v751
  %v757 = vmul.f32 1.0, %v756
  %v759 = vrot.slane %v677, 2
  %v761 = vadd.f32 %v759, %v716
  %v762 = vxor.u32 %v761, 2147483648
  %v763 = vmul.f32 %v762, 1.442695
  %v764 = vpow.pop %v763
  %v765 = vadd.f32 %v764, 1.0
  %v766 = vrcp.pop %v765
  %v767 = vmul.f32 %v765, %v766
  %v768 = vsub.f32 1.0, %v767
  %v769 = vmul.f32 %v766, %v768
  %v770 = vadd.f32 %v766, %v769
  %vm771 = vweird.f32 %v765
  %vm772 = vweird.f32 %v766
  %vm773 = vmor %vm771, %vm772
  %v774 = vsel %vm773, %v766, %v770
  %v775 = vand.u32 2147483647, %v765
  %vm776 = vcmp.eq.f32.partialorder %v775, 8.507059e+37
  %v777 = vand.u32 %v765, 2147483648
  %v778 = vor.u32 1.1754944e-38, %v777
  %v779 = vsel %vm776, %v778, %v774
  %v780 = vmul.f32 1.0, %v779
  %v781 = vmul.f32 %v757, %v736
  %v782 = vrot.slane %v677, 4
  %v784 = vadd.f32 %v782, %v781
  %v785 = vtanh.pop %v784
  %v786 = vsub.f32 1.0, %v780
  %v787 = vmul.f32 %v786, %v785
  %v788 = vmul.f32 %v780, %v675
  %v789 = vadd.f32 %v787, %v788
  %s790 = scalar_lea.vmem %s0, 36
  %v791 = vld [vmem:[%s790] sm:$0x3f]
  %792 = vmatpush.msra.mxu0 %v96
  %793 = vmatpush.msra.mxu0 %v93
  %794 = vmatpush.msra.mxu0 %v90
  %795 = vmatpush.msra.mxu0 %v87
  %796 = vmatpush.msra.mxu0 %v84
  %797 = vmatpush.msra.mxu0 %v81
  %798 = vmatpush.msra.mxu0 %v78
  %799 = vmatpush.msra.mxu0 %v75
  %800 = vmatpush.msra.mxu0 %v72
  %801 = vmatpush.msra.mxu0 %v69
  %802 = vmatpush.msra.mxu0 %v66
  %803 = vmatpush.msra.mxu0 %v63
  %804 = vmatpush.msra.mxu0 %v60
  %805 = vmatpush.msra.mxu0 %v57
  %806 = vmatpush.msra.mxu0 %v54
  %807 = vmatpush.msra.mxu0 %v51
  %808 = vmatmul.f32.gmra.mxu0 %v789
  %v809 = vpop.f32.mrf.mxu0
  %v810 = vadd.f32 %v102, %v809
  %811 = vdwg.mxu0
  %812 = vmatpush.msra.mxu0 %v97
  %813 = vmatpush.msra.mxu0 %v94
  %814 = vmatpush.msra.mxu0 %v91
  %815 = vmatpush.msra.mxu0 %v88
  %816 = vmatpush.msra.mxu0 %v85
  %817 = vmatpush.msra.mxu0 %v82
  %818 = vmatpush.msra.mxu0 %v79
  %819 = vmatpush.msra.mxu0 %v76
  %820 = vmatpush.msra.mxu0 %v73
  %821 = vmatpush.msra.mxu0 %v70
  %822 = vmatpush.msra.mxu0 %v67
  %823 = vmatpush.msra.mxu0 %v64
  %824 = vmatpush.msra.mxu0 %v61
  %825 = vmatpush.msra.mxu0 %v58
  %826 = vmatpush.msra.mxu0 %v55
  %827 = vmatpush.msra.mxu0 %v52
  %828 = vmatmul.f32.gmra.mxu0 %v789
  %v829 = vpop.f32.mrf.mxu0
  %v830 = vadd.f32 %v103, %v829
  %831 = vdwg.mxu0
  %832 = vmatpush.msra.mxu0 %v98
  %833 = vmatpush.msra.mxu0 %v95
  %834 = vmatpush.msra.mxu0 %v92
  %835 = vmatpush.msra.mxu0 %v89
  %836 = vmatpush.msra.mxu0 %v86
  %837 = vmatpush.msra.mxu0 %v83
  %838 = vmatpush.msra.mxu0 %v80
  %839 = vmatpush.msra.mxu0 %v77
  %840 = vmatpush.msra.mxu0 %v74
  %841 = vmatpush.msra.mxu0 %v71
  %842 = vmatpush.msra.mxu0 %v68
  %843 = vmatpush.msra.mxu0 %v65
  %844 = vmatpush.msra.mxu0 %v62
  %845 = vmatpush.msra.mxu0 %v59
  %846 = vmatpush.msra.mxu0 %v56
  %847 = vmatpush.msra.mxu0 %v53
  %848 = vmatmul.f32.gmra.mxu0 %v789
  %v849 = vpop.f32.mrf.mxu0
  %v850 = vadd.f32 %v104, %v849
  %851 = vdwg.mxu0
  %v852 = vadd.f32 %v791, %v810
  %v853 = vxor.u32 %v852, 2147483648
  %v854 = vmul.f32 %v853, 1.442695
  %v855 = vpow.pop %v854
  %v856 = vadd.f32 %v855, 1.0
  %v857 = vrcp.pop %v856
  %v858 = vmul.f32 %v856, %v857
  %v859 = vsub.f32 1.0, %v858
  %v860 = vmul.f32 %v857, %v859
  %v861 = vadd.f32 %v857, %v860
  %vm862 = vweird.f32 %v856
  %vm863 = vweird.f32 %v857
  %vm864 = vmor %vm862, %vm863
  %v865 = vsel %vm864, %v857, %v861
  %v866 = vand.u32 2147483647, %v856
  %vm867 = vcmp.eq.f32.partialorder %v866, 8.507059e+37
  %v868 = vand.u32 %v856, 2147483648
  %v869 = vor.u32 1.1754944e-38, %v868
  %v870 = vsel %vm867, %v869, %v865
  %v871 = vmul.f32 1.0, %v870
  %v873 = vrot.slane %v791, 2
  %v875 = vadd.f32 %v873, %v830
  %v876 = vxor.u32 %v875, 2147483648
  %v877 = vmul.f32 %v876, 1.442695
  %v878 = vpow.pop %v877
  %v879 = vadd.f32 %v878, 1.0
  %v880 = vrcp.pop %v879
  %v881 = vmul.f32 %v879, %v880
  %v882 = vsub.f32 1.0, %v881
  %v883 = vmul.f32 %v880, %v882
  %v884 = vadd.f32 %v880, %v883
  %vm885 = vweird.f32 %v879
  %vm886 = vweird.f32 %v880
  %vm887 = vmor %vm885, %vm886
  %v888 = vsel %vm887, %v880, %v884
  %v889 = vand.u32 2147483647, %v879
  %vm890 = vcmp.eq.f32.partialorder %v889, 8.507059e+37
  %v891 = vand.u32 %v879, 2147483648
  %v892 = vor.u32 1.1754944e-38, %v891
  %v893 = vsel %vm890, %v892, %v888
  %v894 = vmul.f32 1.0, %v893
  %v895 = vmul.f32 %v871, %v850
  %v896 = vrot.slane %v791, 4
  %v898 = vadd.f32 %v896, %v895
  %v899 = vtanh.pop %v898
  %v900 = vsub.f32 1.0, %v894
  %v901 = vmul.f32 %v900, %v899
  %v902 = vmul.f32 %v894, %v789
  %v903 = vadd.f32 %v901, %v902
  %s904 = scalar_lea.vmem %s0, 42
  %v905 = vld [vmem:[%s904] sm:$0x3f]
  %906 = vmatpush.msra.mxu0 %v96
  %907 = vmatpush.msra.mxu0 %v93
  %908 = vmatpush.msra.mxu0 %v90
  %909 = vmatpush.msra.mxu0 %v87
  %910 = vmatpush.msra.mxu0 %v84
  %911 = vmatpush.msra.mxu0 %v81
  %912 = vmatpush.msra.mxu0 %v78
  %913 = vmatpush.msra.mxu0 %v75
  %914 = vmatpush.msra.mxu0 %v72
  %915 = vmatpush.msra.mxu0 %v69
  %916 = vmatpush.msra.mxu0 %v66
  %917 = vmatpush.msra.mxu0 %v63
  %918 = vmatpush.msra.mxu0 %v60
  %919 = vmatpush.msra.mxu0 %v57
  %920 = vmatpush.msra.mxu0 %v54
  %921 = vmatpush.msra.mxu0 %v51
  %922 = vmatmul.f32.gmra.mxu0 %v903
  %v923 = vpop.f32.mrf.mxu0
  %v924 = vadd.f32 %v102, %v923
  %925 = vdwg.mxu0
  %926 = vmatpush.msra.mxu0 %v97
  %927 = vmatpush.msra.mxu0 %v94
  %928 = vmatpush.msra.mxu0 %v91
  %929 = vmatpush.msra.mxu0 %v88
  %930 = vmatpush.msra.mxu0 %v85
  %931 = vmatpush.msra.mxu0 %v82
  %932 = vmatpush.msra.mxu0 %v79
  %933 = vmatpush.msra.mxu0 %v76
  %934 = vmatpush.msra.mxu0 %v73
  %935 = vmatpush.msra.mxu0 %v70
  %936 = vmatpush.msra.mxu0 %v67
  %937 = vmatpush.msra.mxu0 %v64
  %938 = vmatpush.msra.mxu0 %v61
  %939 = vmatpush.msra.mxu0 %v58
  %940 = vmatpush.msra.mxu0 %v55
  %941 = vmatpush.msra.mxu0 %v52
  %942 = vmatmul.f32.gmra.mxu0 %v903
  %v943 = vpop.f32.mrf.mxu0
  %v944 = vadd.f32 %v103, %v943
  %945 = vdwg.mxu0
  %946 = vmatpush.msra.mxu0 %v98
  %947 = vmatpush.msra.mxu0 %v95
  %948 = vmatpush.msra.mxu0 %v92
  %949 = vmatpush.msra.mxu0 %v89
  %950 = vmatpush.msra.mxu0 %v86
  %951 = vmatpush.msra.mxu0 %v83
  %952 = vmatpush.msra.mxu0 %v80
  %953 = vmatpush.msra.mxu0 %v77
  %954 = vmatpush.msra.mxu0 %v74
  %955 = vmatpush.msra.mxu0 %v71
  %956 = vmatpush.msra.mxu0 %v68
  %957 = vmatpush.msra.mxu0 %v65
  %958 = vmatpush.msra.mxu0 %v62
  %959 = vmatpush.msra.mxu0 %v59
  %960 = vmatpush.msra.mxu0 %v56
  %961 = vmatpush.msra.mxu0 %v53
  %962 = vmatmul.f32.gmra.mxu0 %v903
  %v963 = vpop.f32.mrf.mxu0
  %v964 = vadd.f32 %v104, %v963
  %965 = vdwg.mxu0
  %v966 = vadd.f32 %v905, %v924
  %v967 = vxor.u32 %v966, 2147483648
  %v968 = vmul.f32 %v967, 1.442695
  %v969 = vpow.pop %v968
  %v970 = vadd.f32 %v969, 1.0
  %v971 = vrcp.pop %v970
  %v972 = vmul.f32 %v970, %v971
  %v973 = vsub.f32 1.0, %v972
  %v974 = vmul.f32 %v971, %v973
  %v975 = vadd.f32 %v971, %v974
  %vm976 = vweird.f32 %v970
  %vm977 = vweird.f32 %v971
  %vm978 = vmor %vm976, %vm977
  %v979 = vsel %vm978, %v971, %v975
  %v980 = vand.u32 2147483647, %v970
  %vm981 = vcmp.eq.f32.partialorder %v980, 8.507059e+37
  %v982 = vand.u32 %v970, 2147483648
  %v983 = vor.u32 1.1754944e-38, %v982
  %v984 = vsel %vm981, %v983, %v979
  %v985 = vmul.f32 1.0, %v984
  %v987 = vrot.slane %v905, 2
  %v989 = vadd.f32 %v987, %v944
  %v990 = vxor.u32 %v989, 2147483648
  %v991 = vmul.f32 %v990, 1.442695
  %v992 = vpow.pop %v991
  %v993 = vadd.f32 %v992, 1.0
  %v994 = vrcp.pop %v993
  %v995 = vmul.f32 %v993, %v994
  %v996 = vsub.f32 1.0, %v995
  %v997 = vmul.f32 %v994, %v996
  %v998 = vadd.f32 %v994, %v997
  %vm999 = vweird.f32 %v993
  %vm1000 = vweird.f32 %v994
  %vm1001 = vmor %vm999, %vm1000
  %v1002 = vsel %vm1001, %v994, %v998
  %v1003 = vand.u32 2147483647, %v993
  %vm1004 = vcmp.eq.f32.partialorder %v1003, 8.507059e+37
  %v1005 = vand.u32 %v993, 2147483648
  %v1006 = vor.u32 1.1754944e-38, %v1005
  %v1007 = vsel %vm1004, %v1006, %v1002
  %v1008 = vmul.f32 1.0, %v1007
  %v1009 = vmul.f32 %v985, %v964
  %v1010 = vrot.slane %v905, 4
  %v1012 = vadd.f32 %v1010, %v1009
  %v1013 = vtanh.pop %v1012
  %v1014 = vsub.f32 1.0, %v1008
  %v1015 = vmul.f32 %v1014, %v1013
  %v1016 = vmul.f32 %v1008, %v903
  %v1017 = vadd.f32 %v1015, %v1016
  %v1018 = vld [vmem:[%s4] sm:$0xff]
  %v1019 = vld [vmem:[%s4 + $0x8] sm:$0xff]
  %v1020 = vld [vmem:[%s4 + $0x10] sm:$0xff]
  %v1021 = vld [vmem:[%s4 + $0x18] sm:$0xff]
  %v1022 = vld [vmem:[%s4 + $0x20] sm:$0xff]
  %v1023 = vld [vmem:[%s4 + $0x28] sm:$0xff]
  %v1024 = vld [vmem:[%s4 + $0x30] sm:$0xff]
  %v1025 = vld [vmem:[%s4 + $0x38] sm:$0xff]
  %v1026 = vld [vmem:[%s4 + $0x40] sm:$0xff]
  %v1027 = vld [vmem:[%s4 + $0x48] sm:$0xff]
  %v1028 = vld [vmem:[%s4 + $0x50] sm:$0xff]
  %v1029 = vld [vmem:[%s4 + $0x58] sm:$0xff]
  %v1030 = vld [vmem:[%s4 + $0x60] sm:$0xff]
  %v1031 = vld [vmem:[%s4 + $0x68] sm:$0xff]
  %v1032 = vld [vmem:[%s4 + $0x70] sm:$0xff]
  %v1033 = vld [vmem:[%s4 + $0x78] sm:$0xff]
  %v1034 = vld [vmem:[%s4 + $0x80] sm:$0xff]
  %v1035 = vld [vmem:[%s4 + $0x88] sm:$0xff]
  %v1036 = vld [vmem:[%s4 + $0x90] sm:$0xff]
  %v1037 = vld [vmem:[%s4 + $0x98] sm:$0xff]
  %v1038 = vld [vmem:[%s4 + $0xa0] sm:$0xff]
  %v1039 = vld [vmem:[%s4 + $0xa8] sm:$0xff]
  %v1040 = vld [vmem:[%s4 + $0xb0] sm:$0xff]
  %v1041 = vld [vmem:[%s4 + $0xb8] sm:$0xff]
  %v1042 = vld [vmem:[%s4 + $0xc0] sm:$0xff]
  %v1043 = vld [vmem:[%s4 + $0xc8] sm:$0xff]
  %v1044 = vld [vmem:[%s4 + $0xd0] sm:$0xff]
  %v1045 = vld [vmem:[%s4 + $0xd8] sm:$0xff]
  %v1046 = vld [vmem:[%s4 + $0xe0] sm:$0xff]
  %v1047 = vld [vmem:[%s4 + $0xe8] sm:$0xff]
  %v1048 = vld [vmem:[%s4 + $0xf0] sm:$0xff]
  %v1049 = vld [vmem:[%s4 + $0xf8] sm:$0xff]
  %v1050 = vld [vmem:[%s4 + $0x100] sm:$0xff]
  %v1051 = vld [vmem:[%s4 + $0x108] sm:$0xff]
  %v1052 = vld [vmem:[%s4 + $0x110] sm:$0xff]
  %v1053 = vld [vmem:[%s4 + $0x118] sm:$0xff]
  %v1054 = vld [vmem:[%s4 + $0x120] sm:$0xff]
  %v1055 = vld [vmem:[%s4 + $0x128] sm:$0xff]
  %v1056 = vld [vmem:[%s4 + $0x130] sm:$0xff]
  %v1057 = vld [vmem:[%s4 + $0x138] sm:$0xff]
  %v1058 = vld [vmem:[%s4 + $0x140] sm:$0xff]
  %v1059 = vld [vmem:[%s4 + $0x148] sm:$0xff]
  %v1060 = vld [vmem:[%s4 + $0x150] sm:$0xff]
  %v1061 = vld [vmem:[%s4 + $0x158] sm:$0xff]
  %v1062 = vld [vmem:[%s4 + $0x160] sm:$0xff]
  %v1063 = vld [vmem:[%s4 + $0x168] sm:$0xff]
  %v1064 = vld [vmem:[%s4 + $0x170] sm:$0xff]
  %v1065 = vld [vmem:[%s4 + $0x178] sm:$0xff]
  %v1066 = vld [vmem:[%s5] sm:$0x7]
  %v1067 = vld [vmem:[%s1] sm:$0x1f]
  %v1068 = vld [vmem:[%s1 + $0x8] sm:$0x1f]
  %v1069 = vld [vmem:[%s1 + $0x10] sm:$0x1f]
  %v1071 = vperm.slane %v1066, 0
  %v1072 = vperm.slane %v1066, 1
  %v1073 = vperm.slane %v1066, 2
  %1077 = vmatpush.msra.mxu0 %v1063
  %1078 = vmatpush.msra.mxu0 %v1060
  %1079 = vmatpush.msra.mxu0 %v1057
  %1080 = vmatpush.msra.mxu0 %v1054
  %1081 = vmatpush.msra.mxu0 %v1051
  %1082 = vmatpush.msra.mxu0 %v1048
  %1083 = vmatpush.msra.mxu0 %v1045
  %1084 = vmatpush.msra.mxu0 %v1042
  %1085 = vmatpush.msra.mxu0 %v1039
  %1086 = vmatpush.msra.mxu0 %v1036
  %1087 = vmatpush.msra.mxu0 %v1033
  %1088 = vmatpush.msra.mxu0 %v1030
  %1089 = vmatpush.msra.mxu0 %v1027
  %1090 = vmatpush.msra.mxu0 %v1024
  %1091 = vmatpush.msra.mxu0 %v1021
  %1092 = vmatpush.msra.mxu0 %v1018
  %1093 = vmatmul.f32.gmra.mxu0 0.0
  %v1094 = vpop.f32.mrf.mxu0
  %v1095 = vadd.f32 %v1071, %v1094
  %1096 = vdwg.mxu0
  %1097 = vmatpush.msra.mxu0 %v1064
  %1098 = vmatpush.msra.mxu0 %v1061
  %1099 = vmatpush.msra.mxu0 %v1058
  %1100 = vmatpush.msra.mxu0 %v1055
  %1101 = vmatpush.msra.mxu0 %v1052
  %1102 = vmatpush.msra.mxu0 %v1049
  %1103 = vmatpush.msra.mxu0 %v1046
  %1104 = vmatpush.msra.mxu0 %v1043
  %1105 = vmatpush.msra.mxu0 %v1040
  %1106 = vmatpush.msra.mxu0 %v1037
  %1107 = vmatpush.msra.mxu0 %v1034
  %1108 = vmatpush.msra.mxu0 %v1031
  %1109 = vmatpush.msra.mxu0 %v1028
  %1110 = vmatpush.msra.mxu0 %v1025
  %1111 = vmatpush.msra.mxu0 %v1022
  %1112 = vmatpush.msra.mxu0 %v1019
  %1113 = vmatmul.f32.gmra.mxu0 0.0
  %v1114 = vpop.f32.mrf.mxu0
  %v1115 = vadd.f32 %v1072, %v1114
  %1116 = vdwg.mxu0
  %1117 = vmatpush.msra.mxu0 %v1065
  %1118 = vmatpush.msra.mxu0 %v1062
  %1119 = vmatpush.msra.mxu0 %v1059
  %1120 = vmatpush.msra.mxu0 %v1056
  %1121 = vmatpush.msra.mxu0 %v1053
  %1122 = vmatpush.msra.mxu0 %v1050
  %1123 = vmatpush.msra.mxu0 %v1047
  %1124 = vmatpush.msra.mxu0 %v1044
  %1125 = vmatpush.msra.mxu0 %v1041
  %1126 = vmatpush.msra.mxu0 %v1038
  %1127 = vmatpush.msra.mxu0 %v1035
  %1128 = vmatpush.msra.mxu0 %v1032
  %1129 = vmatpush.msra.mxu0 %v1029
  %1130 = vmatpush.msra.mxu0 %v1026
  %1131 = vmatpush.msra.mxu0 %v1023
  %1132 = vmatpush.msra.mxu0 %v1020
  %1133 = vmatmul.f32.gmra.mxu0 0.0
  %v1134 = vpop.f32.mrf.mxu0
  %v1135 = vadd.f32 %v1073, %v1134
  %1136 = vdwg.mxu0
  %v1137 = vadd.f32 %v1067, %v1095
  %v1138 = vxor.u32 %v1137, 2147483648
  %v1139 = vmul.f32 %v1138, 1.442695
  %v1140 = vpow.pop %v1139
  %v1141 = vadd.f32 %v1140, 1.0
  %v1142 = vrcp.pop %v1141
  %v1143 = vmul.f32 %v1141, %v1142
  %v1144 = vsub.f32 1.0, %v1143
  %v1145 = vmul.f32 %v1142, %v1144
  %v1146 = vadd.f32 %v1142, %v1145
  %vm1147 = vweird.f32 %v1141
  %vm1148 = vweird.f32 %v1142
  %vm1149 = vmor %vm1147, %vm1148
  %v1150 = vsel %vm1149, %v1142, %v1146
  %v1151 = vand.u32 2147483647, %v1141
  %vm1152 = vcmp.eq.f32.partialorder %v1151, 8.507059e+37
  %v1153 = vand.u32 %v1141, 2147483648
  %v1154 = vor.u32 1.1754944e-38, %v1153
  %v1155 = vsel %vm1152, %v1154, %v1150
  %v1156 = vmul.f32 1.0, %v1155
  %v1157 = vadd.f32 %v1068, %v1115
  %v1158 = vxor.u32 %v1157, 2147483648
  %v1159 = vmul.f32 %v1158, 1.442695
  %v1160 = vpow.pop %v1159
  %v1161 = vadd.f32 %v1160, 1.0
  %v1162 = vrcp.pop %v1161
  %v1163 = vmul.f32 %v1161, %v1162
  %v1164 = vsub.f32 1.0, %v1163
  %v1165 = vmul.f32 %v1162, %v1164
  %v1166 = vadd.f32 %v1162, %v1165
  %vm1167 = vweird.f32 %v1161
  %vm1168 = vweird.f32 %v1162
  %vm1169 = vmor %vm1167, %vm1168
  %v1170 = vsel %vm1169, %v1162, %v1166
  %v1171 = vand.u32 2147483647, %v1161
  %vm1172 = vcmp.eq.f32.partialorder %v1171, 8.507059e+37
  %v1173 = vand.u32 %v1161, 2147483648
  %v1174 = vor.u32 1.1754944e-38, %v1173
  %v1175 = vsel %vm1172, %v1174, %v1170
  %v1176 = vmul.f32 1.0, %v1175
  %v1177 = vmul.f32 %v1156, %v1135
  %v1178 = vadd.f32 %v1069, %v1177
  %v1179 = vtanh.pop %v1178
  %v1180 = vsub.f32 1.0, %v1176
  %v1181 = vmul.f32 %v1180, %v1179
  %v1182 = vmul.f32 %v1176, 0.0
  %v1183 = vadd.f32 %v1181, %v1182
  %s1184 = scalar_lea.vmem %s1, 24
  %v1185 = vld [vmem:[%s1184] sm:$0x1f]
  %v1186 = vld [vmem:[%s1184 + $0x8] sm:$0x1f]
  %v1187 = vld [vmem:[%s1184 + $0x10] sm:$0x1f]
  %1188 = vmatpush.msra.mxu0 %v1063
  %1189 = vmatpush.msra.mxu0 %v1060
  %1190 = vmatpush.msra.mxu0 %v1057
  %1191 = vmatpush.msra.mxu0 %v1054
  %1192 = vmatpush.msra.mxu0 %v1051
  %1193 = vmatpush.msra.mxu0 %v1048
  %1194 = vmatpush.msra.mxu0 %v1045
  %1195 = vmatpush.msra.mxu0 %v1042
  %1196 = vmatpush.msra.mxu0 %v1039
  %1197 = vmatpush.msra.mxu0 %v1036
  %1198 = vmatpush.msra.mxu0 %v1033
  %1199 = vmatpush.msra.mxu0 %v1030
  %1200 = vmatpush.msra.mxu0 %v1027
  %1201 = vmatpush.msra.mxu0 %v1024
  %1202 = vmatpush.msra.mxu0 %v1021
  %1203 = vmatpush.msra.mxu0 %v1018
  %1204 = vmatmul.f32.gmra.mxu0 %v1183
  %v1205 = vpop.f32.mrf.mxu0
  %v1206 = vadd.f32 %v1071, %v1205
  %1207 = vdwg.mxu0
  %1208 = vmatpush.msra.mxu0 %v1064
  %1209 = vmatpush.msra.mxu0 %v1061
  %1210 = vmatpush.msra.mxu0 %v1058
  %1211 = vmatpush.msra.mxu0 %v1055
  %1212 = vmatpush.msra.mxu0 %v1052
  %1213 = vmatpush.msra.mxu0 %v1049
  %1214 = vmatpush.msra.mxu0 %v1046
  %1215 = vmatpush.msra.mxu0 %v1043
  %1216 = vmatpush.msra.mxu0 %v1040
  %1217 = vmatpush.msra.mxu0 %v1037
  %1218 = vmatpush.msra.mxu0 %v1034
  %1219 = vmatpush.msra.mxu0 %v1031
  %1220 = vmatpush.msra.mxu0 %v1028
  %1221 = vmatpush.msra.mxu0 %v1025
  %1222 = vmatpush.msra.mxu0 %v1022
  %1223 = vmatpush.msra.mxu0 %v1019
  %1224 = vmatmul.f32.gmra.mxu0 %v1183
  %v1225 = vpop.f32.mrf.mxu0
  %v1226 = vadd.f32 %v1072, %v1225
  %1227 = vdwg.mxu0
  %1228 = vmatpush.msra.mxu0 %v1065
  %1229 = vmatpush.msra.mxu0 %v1062
  %1230 = vmatpush.msra.mxu0 %v1059
  %1231 = vmatpush.msra.mxu0 %v1056
  %1232 = vmatpush.msra.mxu0 %v1053
  %1233 = vmatpush.msra.mxu0 %v1050
  %1234 = vmatpush.msra.mxu0 %v1047
  %1235 = vmatpush.msra.mxu0 %v1044
  %1236 = vmatpush.msra.mxu0 %v1041
  %1237 = vmatpush.msra.mxu0 %v1038
  %1238 = vmatpush.msra.mxu0 %v1035
  %1239 = vmatpush.msra.mxu0 %v1032
  %1240 = vmatpush.msra.mxu0 %v1029
  %1241 = vmatpush.msra.mxu0 %v1026
  %1242 = vmatpush.msra.mxu0 %v1023
  %1243 = vmatpush.msra.mxu0 %v1020
  %1244 = vmatmul.f32.gmra.mxu0 %v1183
  %v1245 = vpop.f32.mrf.mxu0
  %v1246 = vadd.f32 %v1073, %v1245
  %1247 = vdwg.mxu0
  %v1248 = vadd.f32 %v1185, %v1206
  %v1249 = vxor.u32 %v1248, 2147483648
  %v1250 = vmul.f32 %v1249, 1.442695
  %v1251 = vpow.pop %v1250
  %v1252 = vadd.f32 %v1251, 1.0
  %v1253 = vrcp.pop %v1252
  %v1254 = vmul.f32 %v1252, %v1253
  %v1255 = vsub.f32 1.0, %v1254
  %v1256 = vmul.f32 %v1253, %v1255
  %v1257 = vadd.f32 %v1253, %v1256
  %vm1258 = vweird.f32 %v1252
  %vm1259 = vweird.f32 %v1253
  %vm1260 = vmor %vm1258, %vm1259
  %v1261 = vsel %vm1260, %v1253, %v1257
  %v1262 = vand.u32 2147483647, %v1252
  %vm1263 = vcmp.eq.f32.partialorder %v1262, 8.507059e+37
  %v1264 = vand.u32 %v1252, 2147483648
  %v1265 = vor.u32 1.1754944e-38, %v1264
  %v1266 = vsel %vm1263, %v1265, %v1261
  %v1267 = vmul.f32 1.0, %v1266
  %v1268 = vadd.f32 %v1186, %v1226
  %v1269 = vxor.u32 %v1268, 2147483648
  %v1270 = vmul.f32 %v1269, 1.442695
  %v1271 = vpow.pop %v1270
  %v1272 = vadd.f32 %v1271, 1.0
  %v1273 = vrcp.pop %v1272
  %v1274 = vmul.f32 %v1272, %v1273
  %v1275 = vsub.f32 1.0, %v1274
  %v1276 = vmul.f32 %v1273, %v1275
  %v1277 = vadd.f32 %v1273, %v1276
  %vm1278 = vweird.f32 %v1272
  %vm1279 = vweird.f32 %v1273
  %vm1280 = vmor %vm1278, %vm1279
  %v1281 = vsel %vm1280, %v1273, %v1277
  %v1282 = vand.u32 2147483647, %v1272
  %vm1283 = vcmp.eq.f32.partialorder %v1282, 8.507059e+37
  %v1284 = vand.u32 %v1272, 2147483648
  %v1285 = vor.u32 1.1754944e-38, %v1284
  %v1286 = vsel %vm1283, %v1285, %v1281
  %v1287 = vmul.f32 1.0, %v1286
  %v1288 = vmul.f32 %v1267, %v1246
  %v1289 = vadd.f32 %v1187, %v1288
  %v1290 = vtanh.pop %v1289
  %v1291 = vsub.f32 1.0, %v1287
  %v1292 = vmul.f32 %v1291, %v1290
  %v1293 = vmul.f32 %v1287, %v1183
  %v1294 = vadd.f32 %v1292, %v1293
  %s1295 = scalar_lea.vmem %s1, 48
  %v1296 = vld [vmem:[%s1295] sm:$0x1f]
  %v1297 = vld [vmem:[%s1295 + $0x8] sm:$0x1f]
  %v1298 = vld [vmem:[%s1295 + $0x10] sm:$0x1f]
  %1299 = vmatpush.msra.mxu0 %v1063
  %1300 = vmatpush.msra.mxu0 %v1060
  %1301 = vmatpush.msra.mxu0 %v1057
  %1302 = vmatpush.msra.mxu0 %v1054
  %1303 = vmatpush.msra.mxu0 %v1051
  %1304 = vmatpush.msra.mxu0 %v1048
  %1305 = vmatpush.msra.mxu0 %v1045
  %1306 = vmatpush.msra.mxu0 %v1042
  %1307 = vmatpush.msra.mxu0 %v1039
  %1308 = vmatpush.msra.mxu0 %v1036
  %1309 = vmatpush.msra.mxu0 %v1033
  %1310 = vmatpush.msra.mxu0 %v1030
  %1311 = vmatpush.msra.mxu0 %v1027
  %1312 = vmatpush.msra.mxu0 %v1024
  %1313 = vmatpush.msra.mxu0 %v1021
  %1314 = vmatpush.msra.mxu0 %v1018
  %1315 = vmatmul.f32.gmra.mxu0 %v1294
  %v1316 = vpop.f32.mrf.mxu0
  %v1317 = vadd.f32 %v1071, %v1316
  %1318 = vdwg.mxu0
  %1319 = vmatpush.msra.mxu0 %v1064
  %1320 = vmatpush.msra.mxu0 %v1061
  %1321 = vmatpush.msra.mxu0 %v1058
  %1322 = vmatpush.msra.mxu0 %v1055
  %1323 = vmatpush.msra.mxu0 %v1052
  %1324 = vmatpush.msra.mxu0 %v1049
  %1325 = vmatpush.msra.mxu0 %v1046
  %1326 = vmatpush.msra.mxu0 %v1043
  %1327 = vmatpush.msra.mxu0 %v1040
  %1328 = vmatpush.msra.mxu0 %v1037
  %1329 = vmatpush.msra.mxu0 %v1034
  %1330 = vmatpush.msra.mxu0 %v1031
  %1331 = vmatpush.msra.mxu0 %v1028
  %1332 = vmatpush.msra.mxu0 %v1025
  %1333 = vmatpush.msra.mxu0 %v1022
  %1334 = vmatpush.msra.mxu0 %v1019
  %1335 = vmatmul.f32.gmra.mxu0 %v1294
  %v1336 = vpop.f32.mrf.mxu0
  %v1337 = vadd.f32 %v1072, %v1336
  %1338 = vdwg.mxu0
  %1339 = vmatpush.msra.mxu0 %v1065
  %1340 = vmatpush.msra.mxu0 %v1062
  %1341 = vmatpush.msra.mxu0 %v1059
  %1342 = vmatpush.msra.mxu0 %v1056
  %1343 = vmatpush.msra.mxu0 %v1053
  %1344 = vmatpush.msra.mxu0 %v1050
  %1345 = vmatpush.msra.mxu0 %v1047
  %1346 = vmatpush.msra.mxu0 %v1044
  %1347 = vmatpush.msra.mxu0 %v1041
  %1348 = vmatpush.msra.mxu0 %v1038
  %1349 = vmatpush.msra.mxu0 %v1035
  %1350 = vmatpush.msra.mxu0 %v1032
  %1351 = vmatpush.msra.mxu0 %v1029
  %1352 = vmatpush.msra.mxu0 %v1026
  %1353 = vmatpush.msra.mxu0 %v1023
  %1354 = vmatpush.msra.mxu0 %v1020
  %1355 = vmatmul.f32.gmra.mxu0 %v1294
  %v1356 = vpop.f32.mrf.mxu0
  %v1357 = vadd.f32 %v1073, %v1356
  %1358 = vdwg.mxu0
  %v1359 = vadd.f32 %v1296, %v1317
  %v1360 = vxor.u32 %v1359, 2147483648
  %v1361 = vmul.f32 %v1360, 1.442695
  %v1362 = vpow.pop %v1361
  %v1363 = vadd.f32 %v1362, 1.0
  %v1364 = vrcp.pop %v1363
  %v1365 = vmul.f32 %v1363, %v1364
  %v1366 = vsub.f32 1.0, %v1365
  %v1367 = vmul.f32 %v1364, %v1366
  %v1368 = vadd.f32 %v1364, %v1367
  %vm1369 = vweird.f32 %v1363
  %vm1370 = vweird.f32 %v1364
  %vm1371 = vmor %vm1369, %vm1370
  %v1372 = vsel %vm1371, %v1364, %v1368
  %v1373 = vand.u32 2147483647, %v1363
  %vm1374 = vcmp.eq.f32.partialorder %v1373, 8.507059e+37
  %v1375 = vand.u32 %v1363, 2147483648
  %v1376 = vor.u32 1.1754944e-38, %v1375
  %v1377 = vsel %vm1374, %v1376, %v1372
  %v1378 = vmul.f32 1.0, %v1377
  %v1379 = vadd.f32 %v1297, %v1337
  %v1380 = vxor.u32 %v1379, 2147483648
  %v1381 = vmul.f32 %v1380, 1.442695
  %v1382 = vpow.pop %v1381
  %v1383 = vadd.f32 %v1382, 1.0
  %v1384 = vrcp.pop %v1383
  %v1385 = vmul.f32 %v1383, %v1384
  %v1386 = vsub.f32 1.0, %v1385
  %v1387 = vmul.f32 %v1384, %v1386
  %v1388 = vadd.f32 %v1384, %v1387
  %vm1389 = vweird.f32 %v1383
  %vm1390 = vweird.f32 %v1384
  %vm1391 = vmor %vm1389, %vm1390
  %v1392 = vsel %vm1391, %v1384, %v1388
  %v1393 = vand.u32 2147483647, %v1383
  %vm1394 = vcmp.eq.f32.partialorder %v1393, 8.507059e+37
  %v1395 = vand.u32 %v1383, 2147483648
  %v1396 = vor.u32 1.1754944e-38, %v1395
  %v1397 = vsel %vm1394, %v1396, %v1392
  %v1398 = vmul.f32 1.0, %v1397
  %v1399 = vmul.f32 %v1378, %v1357
  %v1400 = vadd.f32 %v1298, %v1399
  %v1401 = vtanh.pop %v1400
  %v1402 = vsub.f32 1.0, %v1398
  %v1403 = vmul.f32 %v1402, %v1401
  %v1404 = vmul.f32 %v1398, %v1294
  %v1405 = vadd.f32 %v1403, %v1404
  %s1406 = scalar_lea.vmem %s1, 72
  %v1407 = vld [vmem:[%s1406] sm:$0x1f]
  %v1408 = vld [vmem:[%s1406 + $0x8] sm:$0x1f]
  %v1409 = vld [vmem:[%s1406 + $0x10] sm:$0x1f]
  %1410 = vmatpush.msra.mxu0 %v1063
  %1411 = vmatpush.msra.mxu0 %v1060
  %1412 = vmatpush.msra.mxu0 %v1057
  %1413 = vmatpush.msra.mxu0 %v1054
  %1414 = vmatpush.msra.mxu0 %v1051
  %1415 = vmatpush.msra.mxu0 %v1048
  %1416 = vmatpush.msra.mxu0 %v1045
  %1417 = vmatpush.msra.mxu0 %v1042
  %1418 = vmatpush.msra.mxu0 %v1039
  %1419 = vmatpush.msra.mxu0 %v1036
  %1420 = vmatpush.msra.mxu0 %v1033
  %1421 = vmatpush.msra.mxu0 %v1030
  %1422 = vmatpush.msra.mxu0 %v1027
  %1423 = vmatpush.msra.mxu0 %v1024
  %1424 = vmatpush.msra.mxu0 %v1021
  %1425 = vmatpush.msra.mxu0 %v1018
  %1426 = vmatmul.f32.gmra.mxu0 %v1405
  %v1427 = vpop.f32.mrf.mxu0
  %v1428 = vadd.f32 %v1071, %v1427
  %1429 = vdwg.mxu0
  %1430 = vmatpush.msra.mxu0 %v1064
  %1431 = vmatpush.msra.mxu0 %v1061
  %1432 = vmatpush.msra.mxu0 %v1058
  %1433 = vmatpush.msra.mxu0 %v1055
  %1434 = vmatpush.msra.mxu0 %v1052
  %1435 = vmatpush.msra.mxu0 %v1049
  %1436 = vmatpush.msra.mxu0 %v1046
  %1437 = vmatpush.msra.mxu0 %v1043
  %1438 = vmatpush.msra.mxu0 %v1040
  %1439 = vmatpush.msra.mxu0 %v1037
  %1440 = vmatpush.msra.mxu0 %v1034
  %1441 = vmatpush.msra.mxu0 %v1031
  %1442 = vmatpush.msra.mxu0 %v1028
  %1443 = vmatpush.msra.mxu0 %v1025
  %1444 = vmatpush.msra.mxu0 %v1022
  %1445 = vmatpush.msra.mxu0 %v1019
  %1446 = vmatmul.f32.gmra.mxu0 %v1405
  %v1447 = vpop.f32.mrf.mxu0
  %v1448 = vadd.f32 %v1072, %v1447
  %1449 = vdwg.mxu0
  %1450 = vmatpush.msra.mxu0 %v1065
  %1451 = vmatpush.msra.mxu0 %v1062
  %1452 = vmatpush.msra.mxu0 %v1059
  %1453 = vmatpush.msra.mxu0 %v1056
  %1454 = vmatpush.msra.mxu0 %v1053
  %1455 = vmatpush.msra.mxu0 %v1050
  %1456 = vmatpush.msra.mxu0 %v1047
  %1457 = vmatpush.msra.mxu0 %v1044
  %1458 = vmatpush.msra.mxu0 %v1041
  %1459 = vmatpush.msra.mxu0 %v1038
  %1460 = vmatpush.msra.mxu0 %v1035
  %1461 = vmatpush.msra.mxu0 %v1032
  %1462 = vmatpush.msra.mxu0 %v1029
  %1463 = vmatpush.msra.mxu0 %v1026
  %1464 = vmatpush.msra.mxu0 %v1023
  %1465 = vmatpush.msra.mxu0 %v1020
  %1466 = vmatmul.f32.gmra.mxu0 %v1405
  %v1467 = vpop.f32.mrf.mxu0
  %v1468 = vadd.f32 %v1073, %v1467
  %1469 = vdwg.mxu0
  %v1470 = vadd.f32 %v1407, %v1428
  %v1471 = vxor.u32 %v1470, 2147483648
  %v1472 = vmul.f32 %v1471, 1.442695
  %v1473 = vpow.pop %v1472
  %v1474 = vadd.f32 %v1473, 1.0
  %v1475 = vrcp.pop %v1474
  %v1476 = vmul.f32 %v1474, %v1475
  %v1477 = vsub.f32 1.0, %v1476
  %v1478 = vmul.f32 %v1475, %v1477
  %v1479 = vadd.f32 %v1475, %v1478
  %vm1480 = vweird.f32 %v1474
  %vm1481 = vweird.f32 %v1475
  %vm1482 = vmor %vm1480, %vm1481
  %v1483 = vsel %vm1482, %v1475, %v1479
  %v1484 = vand.u32 2147483647, %v1474
  %vm1485 = vcmp.eq.f32.partialorder %v1484, 8.507059e+37
  %v1486 = vand.u32 %v1474, 2147483648
  %v1487 = vor.u32 1.1754944e-38, %v1486
  %v1488 = vsel %vm1485, %v1487, %v1483
  %v1489 = vmul.f32 1.0, %v1488
  %v1490 = vadd.f32 %v1408, %v1448
  %v1491 = vxor.u32 %v1490, 2147483648
  %v1492 = vmul.f32 %v1491, 1.442695
  %v1493 = vpow.pop %v1492
  %v1494 = vadd.f32 %v1493, 1.0
  %v1495 = vrcp.pop %v1494
  %v1496 = vmul.f32 %v1494, %v1495
  %v1497 = vsub.f32 1.0, %v1496
  %v1498 = vmul.f32 %v1495, %v1497
  %v1499 = vadd.f32 %v1495, %v1498
  %vm1500 = vweird.f32 %v1494
  %vm1501 = vweird.f32 %v1495
  %vm1502 = vmor %vm1500, %vm1501
  %v1503 = vsel %vm1502, %v1495, %v1499
  %v1504 = vand.u32 2147483647, %v1494
  %vm1505 = vcmp.eq.f32.partialorder %v1504, 8.507059e+37
  %v1506 = vand.u32 %v1494, 2147483648
  %v1507 = vor.u32 1.1754944e-38, %v1506
  %v1508 = vsel %vm1505, %v1507, %v1503
  %v1509 = vmul.f32 1.0, %v1508
  %v1510 = vmul.f32 %v1489, %v1468
  %v1511 = vadd.f32 %v1409, %v1510
  %v1512 = vtanh.pop %v1511
  %v1513 = vsub.f32 1.0, %v1509
  %v1514 = vmul.f32 %v1513, %v1512
  %v1515 = vmul.f32 %v1509, %v1405
  %v1516 = vadd.f32 %v1514, %v1515
  %s1517 = scalar_lea.vmem %s1, 96
  %v1518 = vld [vmem:[%s1517] sm:$0x1f]
  %v1519 = vld [vmem:[%s1517 + $0x8] sm:$0x1f]
  %v1520 = vld [vmem:[%s1517 + $0x10] sm:$0x1f]
  %1521 = vmatpush.msra.mxu0 %v1063
  %1522 = vmatpush.msra.mxu0 %v1060
  %1523 = vmatpush.msra.mxu0 %v1057
  %1524 = vmatpush.msra.mxu0 %v1054
  %1525 = vmatpush.msra.mxu0 %v1051
  %1526 = vmatpush.msra.mxu0 %v1048
  %1527 = vmatpush.msra.mxu0 %v1045
  %1528 = vmatpush.msra.mxu0 %v1042
  %1529 = vmatpush.msra.mxu0 %v1039
  %1530 = vmatpush.msra.mxu0 %v1036
  %1531 = vmatpush.msra.mxu0 %v1033
  %1532 = vmatpush.msra.mxu0 %v1030
  %1533 = vmatpush.msra.mxu0 %v1027
  %1534 = vmatpush.msra.mxu0 %v1024
  %1535 = vmatpush.msra.mxu0 %v1021
  %1536 = vmatpush.msra.mxu0 %v1018
  %1537 = vmatmul.f32.gmra.mxu0 %v1516
  %v1538 = vpop.f32.mrf.mxu0
  %v1539 = vadd.f32 %v1071, %v1538
  %1540 = vdwg.mxu0
  %1541 = vmatpush.msra.mxu0 %v1064
  %1542 = vmatpush.msra.mxu0 %v1061
  %1543 = vmatpush.msra.mxu0 %v1058
  %1544 = vmatpush.msra.mxu0 %v1055
  %1545 = vmatpush.msra.mxu0 %v1052
  %1546 = vmatpush.msra.mxu0 %v1049
  %1547 = vmatpush.msra.mxu0 %v1046
  %1548 = vmatpush.msra.mxu0 %v1043
  %1549 = vmatpush.msra.mxu0 %v1040
  %1550 = vmatpush.msra.mxu0 %v1037
  %1551 = vmatpush.msra.mxu0 %v1034
  %1552 = vmatpush.msra.mxu0 %v1031
  %1553 = vmatpush.msra.mxu0 %v1028
  %1554 = vmatpush.msra.mxu0 %v1025
  %1555 = vmatpush.msra.mxu0 %v1022
  %1556 = vmatpush.msra.mxu0 %v1019
  %1557 = vmatmul.f32.gmra.mxu0 %v1516
  %v1558 = vpop.f32.mrf.mxu0
  %v1559 = vadd.f32 %v1072, %v1558
  %1560 = vdwg.mxu0
  %1561 = vmatpush.msra.mxu0 %v1065
  %1562 = vmatpush.msra.mxu0 %v1062
  %1563 = vmatpush.msra.mxu0 %v1059
  %1564 = vmatpush.msra.mxu0 %v1056
  %1565 = vmatpush.msra.mxu0 %v1053
  %1566 = vmatpush.msra.mxu0 %v1050
  %1567 = vmatpush.msra.mxu0 %v1047
  %1568 = vmatpush.msra.mxu0 %v1044
  %1569 = vmatpush.msra.mxu0 %v1041
  %1570 = vmatpush.msra.mxu0 %v1038
  %1571 = vmatpush.msra.mxu0 %v1035
  %1572 = vmatpush.msra.mxu0 %v1032
  %1573 = vmatpush.msra.mxu0 %v1029
  %1574 = vmatpush.msra.mxu0 %v1026
  %1575 = vmatpush.msra.mxu0 %v1023
  %1576 = vmatpush.msra.mxu0 %v1020
  %1577 = vmatmul.f32.gmra.mxu0 %v1516
  %v1578 = vpop.f32.mrf.mxu0
  %v1579 = vadd.f32 %v1073, %v1578
  %1580 = vdwg.mxu0
  %v1581 = vadd.f32 %v1518, %v1539
  %v1582 = vxor.u32 %v1581, 2147483648
  %v1583 = vmul.f32 %v1582, 1.442695
  %v1584 = vpow.pop %v1583
  %v1585 = vadd.f32 %v1584, 1.0
  %v1586 = vrcp.pop %v1585
  %v1587 = vmul.f32 %v1585, %v1586
  %v1588 = vsub.f32 1.0, %v1587
  %v1589 = vmul.f32 %v1586, %v1588
  %v1590 = vadd.f32 %v1586, %v1589
  %vm1591 = vweird.f32 %v1585
  %vm1592 = vweird.f32 %v1586
  %vm1593 = vmor %vm1591, %vm1592
  %v1594 = vsel %vm1593, %v1586, %v1590
  %v1595 = vand.u32 2147483647, %v1585
  %vm1596 = vcmp.eq.f32.partialorder %v1595, 8.507059e+37
  %v1597 = vand.u32 %v1585, 2147483648
  %v1598 = vor.u32 1.1754944e-38, %v1597
  %v1599 = vsel %vm1596, %v1598, %v1594
  %v1600 = vmul.f32 1.0, %v1599
  %v1601 = vadd.f32 %v1519, %v1559
  %v1602 = vxor.u32 %v1601, 2147483648
  %v1603 = vmul.f32 %v1602, 1.442695
  %v1604 = vpow.pop %v1603
  %v1605 = vadd.f32 %v1604, 1.0
  %v1606 = vrcp.pop %v1605
  %v1607 = vmul.f32 %v1605, %v1606
  %v1608 = vsub.f32 1.0, %v1607
  %v1609 = vmul.f32 %v1606, %v1608
  %v1610 = vadd.f32 %v1606, %v1609
  %vm1611 = vweird.f32 %v1605
  %vm1612 = vweird.f32 %v1606
  %vm1613 = vmor %vm1611, %vm1612
  %v1614 = vsel %vm1613, %v1606, %v1610
  %v1615 = vand.u32 2147483647, %v1605
  %vm1616 = vcmp.eq.f32.partialorder %v1615, 8.507059e+37
  %v1617 = vand.u32 %v1605, 2147483648
  %v1618 = vor.u32 1.1754944e-38, %v1617
  %v1619 = vsel %vm1616, %v1618, %v1614
  %v1620 = vmul.f32 1.0, %v1619
  %v1621 = vmul.f32 %v1600, %v1579
  %v1622 = vadd.f32 %v1520, %v1621
  %v1623 = vtanh.pop %v1622
  %v1624 = vsub.f32 1.0, %v1620
  %v1625 = vmul.f32 %v1624, %v1623
  %v1626 = vmul.f32 %v1620, %v1516
  %v1627 = vadd.f32 %v1625, %v1626
  %s1628 = scalar_lea.vmem %s1, 120
  %v1629 = vld [vmem:[%s1628] sm:$0x1f]
  %v1630 = vld [vmem:[%s1628 + $0x8] sm:$0x1f]
  %v1631 = vld [vmem:[%s1628 + $0x10] sm:$0x1f]
  %1632 = vmatpush.msra.mxu0 %v1063
  %1633 = vmatpush.msra.mxu0 %v1060
  %1634 = vmatpush.msra.mxu0 %v1057
  %1635 = vmatpush.msra.mxu0 %v1054
  %1636 = vmatpush.msra.mxu0 %v1051
  %1637 = vmatpush.msra.mxu0 %v1048
  %1638 = vmatpush.msra.mxu0 %v1045
  %1639 = vmatpush.msra.mxu0 %v1042
  %1640 = vmatpush.msra.mxu0 %v1039
  %1641 = vmatpush.msra.mxu0 %v1036
  %1642 = vmatpush.msra.mxu0 %v1033
  %1643 = vmatpush.msra.mxu0 %v1030
  %1644 = vmatpush.msra.mxu0 %v1027
  %1645 = vmatpush.msra.mxu0 %v1024
  %1646 = vmatpush.msra.mxu0 %v1021
  %1647 = vmatpush.msra.mxu0 %v1018
  %1648 = vmatmul.f32.gmra.mxu0 %v1627
  %v1649 = vpop.f32.mrf.mxu0
  %v1650 = vadd.f32 %v1071, %v1649
  %1651 = vdwg.mxu0
  %1652 = vmatpush.msra.mxu0 %v1064
  %1653 = vmatpush.msra.mxu0 %v1061
  %1654 = vmatpush.msra.mxu0 %v1058
  %1655 = vmatpush.msra.mxu0 %v1055
  %1656 = vmatpush.msra.mxu0 %v1052
  %1657 = vmatpush.msra.mxu0 %v1049
  %1658 = vmatpush.msra.mxu0 %v1046
  %1659 = vmatpush.msra.mxu0 %v1043
  %1660 = vmatpush.msra.mxu0 %v1040
  %1661 = vmatpush.msra.mxu0 %v1037
  %1662 = vmatpush.msra.mxu0 %v1034
  %1663 = vmatpush.msra.mxu0 %v1031
  %1664 = vmatpush.msra.mxu0 %v1028
  %1665 = vmatpush.msra.mxu0 %v1025
  %1666 = vmatpush.msra.mxu0 %v1022
  %1667 = vmatpush.msra.mxu0 %v1019
  %1668 = vmatmul.f32.gmra.mxu0 %v1627
  %v1669 = vpop.f32.mrf.mxu0
  %v1670 = vadd.f32 %v1072, %v1669
  %1671 = vdwg.mxu0
  %1672 = vmatpush.msra.mxu0 %v1065
  %1673 = vmatpush.msra.mxu0 %v1062
  %1674 = vmatpush.msra.mxu0 %v1059
  %1675 = vmatpush.msra.mxu0 %v1056
  %1676 = vmatpush.msra.mxu0 %v1053
  %1677 = vmatpush.msra.mxu0 %v1050
  %1678 = vmatpush.msra.mxu0 %v1047
  %1679 = vmatpush.msra.mxu0 %v1044
  %1680 = vmatpush.msra.mxu0 %v1041
  %1681 = vmatpush.msra.mxu0 %v1038
  %1682 = vmatpush.msra.mxu0 %v1035
  %1683 = vmatpush.msra.mxu0 %v1032
  %1684 = vmatpush.msra.mxu0 %v1029
  %1685 = vmatpush.msra.mxu0 %v1026
  %1686 = vmatpush.msra.mxu0 %v1023
  %1687 = vmatpush.msra.mxu0 %v1020
  %1688 = vmatmul.f32.gmra.mxu0 %v1627
  %v1689 = vpop.f32.mrf.mxu0
  %v1690 = vadd.f32 %v1073, %v1689
  %1691 = vdwg.mxu0
  %v1692 = vadd.f32 %v1629, %v1650
  %v1693 = vxor.u32 %v1692, 2147483648
  %v1694 = vmul.f32 %v1693, 1.442695
  %v1695 = vpow.pop %v1694
  %v1696 = vadd.f32 %v1695, 1.0
  %v1697 = vrcp.pop %v1696
  %v1698 = vmul.f32 %v1696, %v1697
  %v1699 = vsub.f32 1.0, %v1698
  %v1700 = vmul.f32 %v1697, %v1699
  %v1701 = vadd.f32 %v1697, %v1700
  %vm1702 = vweird.f32 %v1696
  %vm1703 = vweird.f32 %v1697
  %vm1704 = vmor %vm1702, %vm1703
  %v1705 = vsel %vm1704, %v1697, %v1701
  %v1706 = vand.u32 2147483647, %v1696
  %vm1707 = vcmp.eq.f32.partialorder %v1706, 8.507059e+37
  %v1708 = vand.u32 %v1696, 2147483648
  %v1709 = vor.u32 1.1754944e-38, %v1708
  %v1710 = vsel %vm1707, %v1709, %v1705
  %v1711 = vmul.f32 1.0, %v1710
  %v1712 = vadd.f32 %v1630, %v1670
  %v1713 = vxor.u32 %v1712, 2147483648
  %v1714 = vmul.f32 %v1713, 1.442695
  %v1715 = vpow.pop %v1714
  %v1716 = vadd.f32 %v1715, 1.0
  %v1717 = vrcp.pop %v1716
  %v1718 = vmul.f32 %v1716, %v1717
  %v1719 = vsub.f32 1.0, %v1718
  %v1720 = vmul.f32 %v1717, %v1719
  %v1721 = vadd.f32 %v1717, %v1720
  %vm1722 = vweird.f32 %v1716
  %vm1723 = vweird.f32 %v1717
  %vm1724 = vmor %vm1722, %vm1723
  %v1725 = vsel %vm1724, %v1717, %v1721
  %v1726 = vand.u32 2147483647, %v1716
  %vm1727 = vcmp.eq.f32.partialorder %v1726, 8.507059e+37
  %v1728 = vand.u32 %v1716, 2147483648
  %v1729 = vor.u32 1.1754944e-38, %v1728
  %v1730 = vsel %vm1727, %v1729, %v1725
  %v1731 = vmul.f32 1.0, %v1730
  %v1732 = vmul.f32 %v1711, %v1690
  %v1733 = vadd.f32 %v1631, %v1732
  %v1734 = vtanh.pop %v1733
  %v1735 = vsub.f32 1.0, %v1731
  %v1736 = vmul.f32 %v1735, %v1734
  %v1737 = vmul.f32 %v1731, %v1627
  %v1738 = vadd.f32 %v1736, %v1737
  %v1739 = vld [vmem:[%s10] sm:$0x3]
  %v1740 = vld [vmem:[%s6] sm:$0xff]
  %v1741 = vld [vmem:[%s6 + $0x8] sm:$0xff]
  %v1742 = vld [vmem:[%s6 + $0x10] sm:$0xff]
  %v1743 = vld [vmem:[%s6 + $0x18] sm:$0xff]
  %v1744 = vld [vmem:[%s6 + $0x20] sm:$0xff]
  %v1745 = vld [vmem:[%s6 + $0x28] sm:$0xff]
  %v1746 = vld [vmem:[%s6 + $0x30] sm:$0xff]
  %v1747 = vld [vmem:[%s6 + $0x38] sm:$0xff]
  %v1748 = vld [vmem:[%s6 + $0x40] sm:$0xff]
  %v1749 = vld [vmem:[%s6 + $0x48] sm:$0xff]
  %v1750 = vld [vmem:[%s6 + $0x50] sm:$0xff]
  %v1751 = vld [vmem:[%s6 + $0x58] sm:$0xff]
  %v1752 = vld [vmem:[%s6 + $0x60] sm:$0xff]
  %v1753 = vld [vmem:[%s6 + $0x68] sm:$0xff]
  %v1754 = vld [vmem:[%s6 + $0x70] sm:$0xff]
  %v1755 = vld [vmem:[%s6 + $0x78] sm:$0xff]
  %v1756 = vld [vmem:[%s6 + $0x80] sm:$0xff]
  %v1757 = vld [vmem:[%s6 + $0x88] sm:$0xff]
  %v1758 = vld [vmem:[%s6 + $0x90] sm:$0xff]
  %v1759 = vld [vmem:[%s6 + $0x98] sm:$0xff]
  %v1760 = vld [vmem:[%s6 + $0xa0] sm:$0xff]
  %v1761 = vld [vmem:[%s6 + $0xa8] sm:$0xff]
  %v1762 = vld [vmem:[%s6 + $0xb0] sm:$0xff]
  %v1763 = vld [vmem:[%s6 + $0xb8] sm:$0xff]
  %v1764 = vld [vmem:[%s6 + $0xc0] sm:$0xff]
  %v1765 = vld [vmem:[%s6 + $0xc8] sm:$0xff]
  %v1766 = vld [vmem:[%s6 + $0xd0] sm:$0xff]
  %v1767 = vld [vmem:[%s6 + $0xd8] sm:$0xff]
  %v1768 = vld [vmem:[%s6 + $0xe0] sm:$0xff]
  %v1769 = vld [vmem:[%s6 + $0xe8] sm:$0xff]
  %v1770 = vld [vmem:[%s6 + $0xf0] sm:$0xff]
  %v1771 = vld [vmem:[%s6 + $0xf8] sm:$0xff]
  %v1772 = vld [vmem:[%s6 + $0x100] sm:$0xff]
  %v1773 = vld [vmem:[%s6 + $0x108] sm:$0xff]
  %v1774 = vld [vmem:[%s6 + $0x110] sm:$0xff]
  %v1775 = vld [vmem:[%s6 + $0x118] sm:$0xff]
  %v1776 = vld [vmem:[%s6 + $0x120] sm:$0xff]
  %v1777 = vld [vmem:[%s6 + $0x128] sm:$0xff]
  %v1778 = vld [vmem:[%s6 + $0x130] sm:$0xff]
  %v1779 = vld [vmem:[%s6 + $0x138] sm:$0xff]
  %v1780 = vld [vmem:[%s6 + $0x140] sm:$0xff]
  %v1781 = vld [vmem:[%s6 + $0x148] sm:$0xff]
  %v1782 = vld [vmem:[%s6 + $0x150] sm:$0xff]
  %v1783 = vld [vmem:[%s6 + $0x158] sm:$0xff]
  %v1784 = vld [vmem:[%s6 + $0x160] sm:$0xff]
  %v1785 = vld [vmem:[%s6 + $0x168] sm:$0xff]
  %v1786 = vld [vmem:[%s6 + $0x170] sm:$0xff]
  %v1787 = vld [vmem:[%s6 + $0x178] sm:$0xff]
  %v1788 = vld [vmem:[%s7] sm:$0x7]
  %v1790 = vperm.slane %v1788, 0
  %v1791 = vperm.slane %v1788, 1
  %v1792 = vperm.slane %v1788, 2
  %1796 = vmatpush.msra.mxu0 %v1785
  %1797 = vmatpush.msra.mxu0 %v1782
  %1798 = vmatpush.msra.mxu0 %v1779
  %1799 = vmatpush.msra.mxu0 %v1776
  %1800 = vmatpush.msra.mxu0 %v1773
  %1801 = vmatpush.msra.mxu0 %v1770
  %1802 = vmatpush.msra.mxu0 %v1767
  %1803 = vmatpush.msra.mxu0 %v1764
  %1804 = vmatpush.msra.mxu0 %v1761
  %1805 = vmatpush.msra.mxu0 %v1758
  %1806 = vmatpush.msra.mxu0 %v1755
  %1807 = vmatpush.msra.mxu0 %v1752
  %1808 = vmatpush.msra.mxu0 %v1749
  %1809 = vmatpush.msra.mxu0 %v1746
  %1810 = vmatpush.msra.mxu0 %v1743
  %1811 = vmatpush.msra.mxu0 %v1740
  %1812 = vmatmul.f32.gmra.mxu0 %v1017
  %v1813 = vpop.f32.mrf.mxu0
  %v1814 = vadd.f32 %v1790, %v1813
  %1815 = vdwg.mxu0
  %1816 = vmatpush.msra.mxu0 %v1786
  %1817 = vmatpush.msra.mxu0 %v1783
  %1818 = vmatpush.msra.mxu0 %v1780
  %1819 = vmatpush.msra.mxu0 %v1777
  %1820 = vmatpush.msra.mxu0 %v1774
  %1821 = vmatpush.msra.mxu0 %v1771
  %1822 = vmatpush.msra.mxu0 %v1768
  %1823 = vmatpush.msra.mxu0 %v1765
  %1824 = vmatpush.msra.mxu0 %v1762
  %1825 = vmatpush.msra.mxu0 %v1759
  %1826 = vmatpush.msra.mxu0 %v1756
  %1827 = vmatpush.msra.mxu0 %v1753
  %1828 = vmatpush.msra.mxu0 %v1750
  %1829 = vmatpush.msra.mxu0 %v1747
  %1830 = vmatpush.msra.mxu0 %v1744
  %1831 = vmatpush.msra.mxu0 %v1741
  %1832 = vmatmul.f32.gmra.mxu0 %v1017
  %v1833 = vpop.f32.mrf.mxu0
  %v1834 = vadd.f32 %v1791, %v1833
  %1835 = vdwg.mxu0
  %1836 = vmatpush.msra.mxu0 %v1787
  %1837 = vmatpush.msra.mxu0 %v1784
  %1838 = vmatpush.msra.mxu0 %v1781
  %1839 = vmatpush.msra.mxu0 %v1778
  %1840 = vmatpush.msra.mxu0 %v1775
  %1841 = vmatpush.msra.mxu0 %v1772
  %1842 = vmatpush.msra.mxu0 %v1769
  %1843 = vmatpush.msra.mxu0 %v1766
  %1844 = vmatpush.msra.mxu0 %v1763
  %1845 = vmatpush.msra.mxu0 %v1760
  %1846 = vmatpush.msra.mxu0 %v1757
  %1847 = vmatpush.msra.mxu0 %v1754
  %1848 = vmatpush.msra.mxu0 %v1751
  %1849 = vmatpush.msra.mxu0 %v1748
  %1850 = vmatpush.msra.mxu0 %v1745
  %1851 = vmatpush.msra.mxu0 %v1742
  %1852 = vmatmul.f32.gmra.mxu0 %v1017
  %v1853 = vpop.f32.mrf.mxu0
  %v1854 = vadd.f32 %v1792, %v1853
  %1855 = vdwg.mxu0
  %v1856 = vld [vmem:[%s8] sm:$0xff]
  %v1857 = vld [vmem:[%s8 + $0x8] sm:$0xff]
  %v1858 = vld [vmem:[%s8 + $0x10] sm:$0xff]
  %v1859 = vld [vmem:[%s8 + $0x18] sm:$0xff]
  %v1860 = vld [vmem:[%s8 + $0x20] sm:$0xff]
  %v1861 = vld [vmem:[%s8 + $0x28] sm:$0xff]
  %v1862 = vld [vmem:[%s8 + $0x30] sm:$0xff]
  %v1863 = vld [vmem:[%s8 + $0x38] sm:$0xff]
  %v1864 = vld [vmem:[%s8 + $0x40] sm:$0xff]
  %v1865 = vld [vmem:[%s8 + $0x48] sm:$0xff]
  %v1866 = vld [vmem:[%s8 + $0x50] sm:$0xff]
  %v1867 = vld [vmem:[%s8 + $0x58] sm:$0xff]
  %v1868 = vld [vmem:[%s8 + $0x60] sm:$0xff]
  %v1869 = vld [vmem:[%s8 + $0x68] sm:$0xff]
  %v1870 = vld [vmem:[%s8 + $0x70] sm:$0xff]
  %v1871 = vld [vmem:[%s8 + $0x78] sm:$0xff]
  %v1872 = vld [vmem:[%s8 + $0x80] sm:$0xff]
  %v1873 = vld [vmem:[%s8 + $0x88] sm:$0xff]
  %v1874 = vld [vmem:[%s8 + $0x90] sm:$0xff]
  %v1875 = vld [vmem:[%s8 + $0x98] sm:$0xff]
  %v1876 = vld [vmem:[%s8 + $0xa0] sm:$0xff]
  %v1877 = vld [vmem:[%s8 + $0xa8] sm:$0xff]
  %v1878 = vld [vmem:[%s8 + $0xb0] sm:$0xff]
  %v1879 = vld [vmem:[%s8 + $0xb8] sm:$0xff]
  %v1880 = vld [vmem:[%s8 + $0xc0] sm:$0xff]
  %v1881 = vld [vmem:[%s8 + $0xc8] sm:$0xff]
  %v1882 = vld [vmem:[%s8 + $0xd0] sm:$0xff]
  %v1883 = vld [vmem:[%s8 + $0xd8] sm:$0xff]
  %v1884 = vld [vmem:[%s8 + $0xe0] sm:$0xff]
  %v1885 = vld [vmem:[%s8 + $0xe8] sm:$0xff]
  %v1886 = vld [vmem:[%s8 + $0xf0] sm:$0xff]
  %v1887 = vld [vmem:[%s8 + $0xf8] sm:$0xff]
  %v1888 = vld [vmem:[%s8 + $0x100] sm:$0xff]
  %v1889 = vld [vmem:[%s8 + $0x108] sm:$0xff]
  %v1890 = vld [vmem:[%s8 + $0x110] sm:$0xff]
  %v1891 = vld [vmem:[%s8 + $0x118] sm:$0xff]
  %v1892 = vld [vmem:[%s8 + $0x120] sm:$0xff]
  %v1893 = vld [vmem:[%s8 + $0x128] sm:$0xff]
  %v1894 = vld [vmem:[%s8 + $0x130] sm:$0xff]
  %v1895 = vld [vmem:[%s8 + $0x138] sm:$0xff]
  %v1896 = vld [vmem:[%s8 + $0x140] sm:$0xff]
  %v1897 = vld [vmem:[%s8 + $0x148] sm:$0xff]
  %v1898 = vld [vmem:[%s8 + $0x150] sm:$0xff]
  %v1899 = vld [vmem:[%s8 + $0x158] sm:$0xff]
  %v1900 = vld [vmem:[%s8 + $0x160] sm:$0xff]
  %v1901 = vld [vmem:[%s8 + $0x168] sm:$0xff]
  %v1902 = vld [vmem:[%s8 + $0x170] sm:$0xff]
  %v1903 = vld [vmem:[%s8 + $0x178] sm:$0xff]
  %v1904 = vld [vmem:[%s9] sm:$0x7]
  %v1906 = vperm.slane %v1904, 0
  %v1907 = vperm.slane %v1904, 1
  %v1908 = vperm.slane %v1904, 2
  %1912 = vmatpush.msra.mxu0 %v1901
  %1913 = vmatpush.msra.mxu0 %v1898
  %1914 = vmatpush.msra.mxu0 %v1895
  %1915 = vmatpush.msra.mxu0 %v1892
  %1916 = vmatpush.msra.mxu0 %v1889
  %1917 = vmatpush.msra.mxu0 %v1886
  %1918 = vmatpush.msra.mxu0 %v1883
  %1919 = vmatpush.msra.mxu0 %v1880
  %1920 = vmatpush.msra.mxu0 %v1877
  %1921 = vmatpush.msra.mxu0 %v1874
  %1922 = vmatpush.msra.mxu0 %v1871
  %1923 = vmatpush.msra.mxu0 %v1868
  %1924 = vmatpush.msra.mxu0 %v1865
  %1925 = vmatpush.msra.mxu0 %v1862
  %1926 = vmatpush.msra.mxu0 %v1859
  %1927 = vmatpush.msra.mxu0 %v1856
  %1928 = vmatmul.f32.gmra.mxu0 %v1739
  %v1929 = vpop.f32.mrf.mxu0
  %v1930 = vadd.f32 %v1906, %v1929
  %1931 = vdwg.mxu0
  %1932 = vmatpush.msra.mxu0 %v1902
  %1933 = vmatpush.msra.mxu0 %v1899
  %1934 = vmatpush.msra.mxu0 %v1896
  %1935 = vmatpush.msra.mxu0 %v1893
  %1936 = vmatpush.msra.mxu0 %v1890
  %1937 = vmatpush.msra.mxu0 %v1887
  %1938 = vmatpush.msra.mxu0 %v1884
  %1939 = vmatpush.msra.mxu0 %v1881
  %1940 = vmatpush.msra.mxu0 %v1878
  %1941 = vmatpush.msra.mxu0 %v1875
  %1942 = vmatpush.msra.mxu0 %v1872
  %1943 = vmatpush.msra.mxu0 %v1869
  %1944 = vmatpush.msra.mxu0 %v1866
  %1945 = vmatpush.msra.mxu0 %v1863
  %1946 = vmatpush.msra.mxu0 %v1860
  %1947 = vmatpush.msra.mxu0 %v1857
  %1948 = vmatmul.f32.gmra.mxu0 %v1739
  %v1949 = vpop.f32.mrf.mxu0
  %v1950 = vadd.f32 %v1907, %v1949
  %1951 = vdwg.mxu0
  %1952 = vmatpush.msra.mxu0 %v1903
  %1953 = vmatpush.msra.mxu0 %v1900
  %1954 = vmatpush.msra.mxu0 %v1897
  %1955 = vmatpush.msra.mxu0 %v1894
  %1956 = vmatpush.msra.mxu0 %v1891
  %1957 = vmatpush.msra.mxu0 %v1888
  %1958 = vmatpush.msra.mxu0 %v1885
  %1959 = vmatpush.msra.mxu0 %v1882
  %1960 = vmatpush.msra.mxu0 %v1879
  %1961 = vmatpush.msra.mxu0 %v1876
  %1962 = vmatpush.msra.mxu0 %v1873
  %1963 = vmatpush.msra.mxu0 %v1870
  %1964 = vmatpush.msra.mxu0 %v1867
  %1965 = vmatpush.msra.mxu0 %v1864
  %1966 = vmatpush.msra.mxu0 %v1861
  %1967 = vmatpush.msra.mxu0 %v1858
  %1968 = vmatmul.f32.gmra.mxu0 %v1739
  %v1969 = vpop.f32.mrf.mxu0
  %v1970 = vadd.f32 %v1908, %v1969
  %1971 = vdwg.mxu0
  %v1972 = vadd.f32 %v1814, %v1930
  %v1973 = vxor.u32 %v1972, 2147483648
  %v1974 = vmul.f32 %v1973, 1.442695
  %v1975 = vpow.pop %v1974
  %v1976 = vadd.f32 %v1975, 1.0
  %v1977 = vrcp.pop %v1976
  %v1978 = vmul.f32 %v1976, %v1977
  %v1979 = vsub.f32 1.0, %v1978
  %v1980 = vmul.f32 %v1977, %v1979
  %v1981 = vadd.f32 %v1977, %v1980
  %vm1982 = vweird.f32 %v1976
  %vm1983 = vweird.f32 %v1977
  %vm1984 = vmor %vm1982, %vm1983
  %v1985 = vsel %vm1984, %v1977, %v1981
  %v1986 = vand.u32 2147483647, %v1976
  %vm1987 = vcmp.eq.f32.partialorder %v1986, 8.507059e+37
  %v1988 = vand.u32 %v1976, 2147483648
  %v1989 = vor.u32 1.1754944e-38, %v1988
  %v1990 = vsel %vm1987, %v1989, %v1985
  %v1991 = vmul.f32 1.0, %v1990
  %v1992 = vadd.f32 %v1834, %v1950
  %v1993 = vxor.u32 %v1992, 2147483648
  %v1994 = vmul.f32 %v1993, 1.442695
  %v1995 = vpow.pop %v1994
  %v1996 = vadd.f32 %v1995, 1.0
  %v1997 = vrcp.pop %v1996
  %v1998 = vmul.f32 %v1996, %v1997
  %v1999 = vsub.f32 1.0, %v1998
  %v2000 = vmul.f32 %v1997, %v1999
  %v2001 = vadd.f32 %v1997, %v2000
  %vm2002 = vweird.f32 %v1996
  %vm2003 = vweird.f32 %v1997
  %vm2004 = vmor %vm2002, %vm2003
  %v2005 = vsel %vm2004, %v1997, %v2001
  %v2006 = vand.u32 2147483647, %v1996
  %vm2007 = vcmp.eq.f32.partialorder %v2006, 8.507059e+37
  %v2008 = vand.u32 %v1996, 2147483648
  %v2009 = vor.u32 1.1754944e-38, %v2008
  %v2010 = vsel %vm2007, %v2009, %v2005
  %v2011 = vmul.f32 1.0, %v2010
  %v2012 = vmul.f32 %v1991, %v1970
  %v2013 = vadd.f32 %v1854, %v2012
  %v2014 = vtanh.pop %v2013
  %v2015 = vsub.f32 1.0, %v2011
  %v2016 = vmul.f32 %v2015, %v2014
  %v2017 = vmul.f32 %v2011, %v1739
  %v2018 = vadd.f32 %v2016, %v2017
  %v2019 = vld [vmem:[%s11] sm:$0x1]
  %v2021 = vperm.slane %v2019, 0
  %v2023 = vmul.f32 %v2018, %v2021
  %vm2024 = vcmask 1041408
  %v2025 = vsel %vm2024, %v2023, 0.0
  %2026 = vadd.xlane.f32.xlu0 %v2025
  %v2027 = vpop.xlane.xlu0 %2026
  %v2028 = vld [vmem:[%s12] sm:$0x1]
  %2029 = vmatpush.xpose.msra.mxu0 0.0
  %2030 = vmatpush.xpose.msra.mxu0 0.0
  %2031 = vmatpush.xpose.msra.mxu0 0.0
  %2032 = vmatpush.xpose.msra.mxu0 0.0
  %2033 = vmatpush.xpose.msra.mxu0 0.0
  %2034 = vmatpush.xpose.msra.mxu0 0.0
  %2035 = vmatpush.xpose.msra.mxu0 0.0
  %2036 = vmatpush.xpose.msra.mxu0 0.0
  %2037 = vmatpush.xpose.msra.mxu0 0.0
  %2038 = vmatpush.xpose.msra.mxu0 0.0
  %2039 = vmatpush.xpose.msra.mxu0 0.0
  %2040 = vmatpush.xpose.msra.mxu0 0.0
  %2041 = vmatpush.xpose.msra.mxu0 0.0
  %2042 = vmatpush.xpose.msra.mxu0 0.0
  %2043 = vmatpush.xpose.msra.mxu0 0.0
  %2044 = vmatpush.xpose.msra.mxu0 %v1738
  %2045 = vmatmul.f32.gmra.mxu0 %v2028
  %v2046 = vpop.f32.mrf.mxu0
  %v2047 = vadd.f32 0.0, %v2046
  %2048 = vdwg.mxu0
  %v2049 = vperm.slane %v2047, 0
  %v2050 = vadd.f32 %v2027, %v2049
  %v2051 = vld [vmem:[#allocation2] sm:$0x1]
  %v2053 = vperm.slane %v2051, 0
  %2054 = vset.pattern.permute.xlu0 0
  %2055 = vperm.xlu0 %2054, %v2053
  %v2056 = vpop.permute.xlu0 %2055
  %v2058 = vadd.f32 %v2050, %v2056
  %v2059 = vmax.f32 %v2058, 0.0
  %vm2060 = vcmask 33792
  %2061 = vst.msk [vmem:[%s14] sm:$0x3] %vm2060, %v2059
  %2062 = vst [vmem:[%s15] sm:$0x3] %v2018
  // Predicated region
  $region58: #{gru_network_forward.1} parent=0 // pred_check
    _
  $region59: #{gru_network_forward.1} parent=0 // pred_check_branch
    %2064 = sbr.rel (0) target = $region61
  $region60: #{gru_network_forward.1} parent=0 // pred_region
    _
  $region61: #{gru_network_forward.1} parent=0 // pred_fallthru
    _
  // Predicated region
  $region62: #{gru_network_forward.1} parent=0 // pred_check
    _
  $region63: #{gru_network_forward.1} parent=0 // pred_check_branch
    %2066 = sbr.rel (0) target = $region65
  $region64: #{gru_network_forward.1} parent=0 // pred_region
    _
  $region65: #{gru_network_forward.1} parent=0 // pred_fallthru
    _
  // Predicated region
  $region66: #{gru_network_forward.1} parent=0 // pred_check
    _
  $region67: #{gru_network_forward.1} parent=0 // pred_check_branch
    %2068 = sbr.rel (0) target = $region69
  $region68: #{gru_network_forward.1} parent=0 // pred_region
    _
  $region69: #{gru_network_forward.1} parent=0 // pred_fallthru
    _
  // Predicated region
  $region70: #{gru_network_forward.1} parent=0 // pred_check
    _
  $region71: #{gru_network_forward.1} parent=0 // pred_check_branch
    %2070 = sbr.rel (0) target = $region73
  $region72: #{gru_network_forward.1} parent=0 // pred_region
    _
  $region73: #{gru_network_forward.1} parent=0 // pred_fallthru
    _

</llo_original>
